<compile_context>
chip_gen: v7x
topology: tpu7x:2x2x1
jax: 0.10.0
libtpu: 0.0.40
codegen_flags: <defaults>
</compile_context>

<pallas_src>
import functools

import jax
import jax.numpy as jnp
from jax import lax
from jax.experimental import pallas as pl
from jax.experimental.pallas import tpu as pltpu

LANE = 128
SUBLANE = 8
_BN_EPS = 1e-5        # torch.nn.BatchNorm1d default eps
_NORM_EPS = 1e-12     # Normalization module epsilon
_LEAKY_SLOPE = 0.01   # torch.nn.LeakyReLU default negative_slope


def _round_up(v, m):
    return ((v + m - 1) // m) * m


def _leaky_relu(x, slope=_LEAKY_SLOPE):
    return jnp.where(x >= 0, x, slope * x)


def _vmem_capacity_bytes():
    try:
        return int(pltpu.get_tpu_info().vmem_capacity_bytes)
    except Exception:
        return 64 * 1024 * 1024  # conservative (v7x-sized) if the query fails


# ----------------------------------------------------------------------------
# In-kernel building blocks
# ----------------------------------------------------------------------------
def _normalize(x, true_n):
    """Normalization module: (x - mean) / (unbiased std + 1e-12), reduced over
    the first `true_n` features (any remaining lanes are zero padding)."""
    inv_n = 1.0 / true_n
    if x.shape[-1] != true_n:
        col = lax.broadcasted_iota(jnp.int32, x.shape, 1)
        mask = col < true_n
        u = jnp.sum(jnp.where(mask, x, 0.0), axis=-1, keepdims=True) * inv_n
        d = jnp.where(mask, x - u, 0.0)
    else:
        u = jnp.sum(x, axis=-1, keepdims=True) * inv_n
        d = x - u
    var = jnp.sum(d * d, axis=-1, keepdims=True) * (1.0 / (true_n - 1))
    return d / (jnp.sqrt(var) + _NORM_EPS)


def _softmax_head(h, w_out, b_out, n_out):
    """Output Linear + softmax over the first n_out (real) classes."""
    logits = jnp.dot(h.astype(w_out.dtype), w_out,
                     preferred_element_type=jnp.float32) + b_out
    col = lax.broadcasted_iota(jnp.int32, logits.shape, 1)
    logits = jnp.where(col < n_out, logits, -1e30)
    m = jnp.max(logits, axis=-1, keepdims=True)
    e = jnp.exp(logits - m)
    s = jnp.sum(e, axis=-1, keepdims=True)
    r = pl.reciprocal(s, approx=True)      # EUP slot
    r = r * (2.0 - s * r)                  # one Newton step -> ~full f32 precision
    return e * r


# ----------------------------------------------------------------------------
# Kernels
# ----------------------------------------------------------------------------
def _nn_kernel_resident(x_ref, w_in_ref, b_in_ref, wb_ref, bb_ref,
                        w_out_ref, b_out_ref, o_ref,
                        *, num_blocks, n_out, d_in):
    """All weights VMEM-resident (constant index_map, single-buffered)."""
    x = _normalize(x_ref[...], d_in)

    # Input layer: Linear (+ folded eval-BN) -> LeakyReLU -> Dropout(identity)
    h = jnp.dot(x.astype(w_in_ref.dtype), w_in_ref[...],
                preferred_element_type=jnp.float32) + b_in_ref[...]
    h = _leaky_relu(h)

    # Residual blocks: Linear(+folded BN) -> +residual -> LeakyReLU -> Dropout(id)
    if num_blocks <= 8:
        for l in range(num_blocks):                       # small L: static unroll
            h = _leaky_relu(
                jnp.dot(h.astype(wb_ref.dtype), wb_ref[l],
                        preferred_element_type=jnp.float32)
                + bb_ref[l] + h)
    else:
        def body(l, h):                                   # large L: visible loop
            return _leaky_relu(
                jnp.dot(h.astype(wb_ref.dtype), wb_ref[l],
                        preferred_element_type=jnp.float32)
                + bb_ref[l] + h)
        h = lax.fori_loop(0, num_blocks, body, h, unroll=4)

    o_ref[...] = _softmax_head(h, w_out_ref[...], b_out_ref[...],
                               n_out).astype(o_ref.dtype)


def _nn_kernel_stream(x_ref, w_in_ref, b_in_ref, wb_hbm_ref, bb_ref,
                      w_out_ref, b_out_ref, o_ref, w_buf, sem,
                      *, num_blocks, n_out, d_in):
    """Block weights streamed from HBM one layer at a time (double-buffered),
    for models whose L*H^2 does not fit in the VMEM budget (esp. v7x 64 MiB)."""
    # Prefetch layer-0 weights while the normalization + input matmul run.
    pltpu.make_async_copy(wb_hbm_ref.at[0], w_buf.at[0], sem.at[0]).start()

    x = _normalize(x_ref[...], d_in)
    h = jnp.dot(x.astype(w_in_ref.dtype), w_in_ref[...],
                preferred_element_type=jnp.float32) + b_in_ref[...]
    h = _leaky_relu(h)

    def body(l, h):
        slot = l & 1
        # Wait for layer l's weights; kick off layer l+1's DMA before the matmul
        # so it hides under the MXU work.
        pltpu.make_async_copy(wb_hbm_ref.at[l], w_buf.at[slot], sem.at[slot]).wait()

        @pl.when(l + 1 < num_blocks)
        def _():
            pltpu.make_async_copy(wb_hbm_ref.at[l + 1], w_buf.at[1 - slot],
                                  sem.at[1 - slot]).start()

        return _leaky_relu(
            jnp.dot(h.astype(w_buf.dtype), w_buf[slot],
                    preferred_element_type=jnp.float32)
            + bb_ref[l] + h)

    h = lax.fori_loop(0, num_blocks, body, h, unroll=2)

    o_ref[...] = _softmax_head(h, w_out_ref[...], b_out_ref[...],
                               n_out).astype(o_ref.dtype)


# ----------------------------------------------------------------------------
# Parameter handling
# ----------------------------------------------------------------------------
def init_params(key, input_node, hidden_layer, hidden_node, out_node=7):
    """Deterministic PyTorch-style init. Linear weights stored (in, out)."""
    ks = jax.random.split(key, 8)

    def lin(k, fan_in, fan_out):
        bound = 1.0 / jnp.sqrt(jnp.float32(fan_in))
        kw, kb = jax.random.split(k)
        w = jax.random.uniform(kw, (fan_in, fan_out), jnp.float32, -bound, bound)
        b = jax.random.uniform(kb, (1, fan_out), jnp.float32, -bound, bound)
        return w, b

    w_in, b_in = lin(ks[0], input_node, hidden_node)
    g_in = jnp.ones((1, hidden_node), jnp.float32)     # BatchNorm default weight
    be_in = jnp.zeros((1, hidden_node), jnp.float32)   # BatchNorm default bias

    blk_keys = jax.random.split(ks[1], max(hidden_layer, 1))
    wbs, bbs = [], []
    for l in range(hidden_layer):
        w, b = lin(blk_keys[l], hidden_node, hidden_node)
        wbs.append(w)
        bbs.append(b[0])
    if hidden_layer:
        wb = jnp.stack(wbs)
        bb = jnp.stack(bbs)
    else:
        wb = jnp.zeros((0, hidden_node, hidden_node), jnp.float32)
        bb = jnp.zeros((0, hidden_node), jnp.float32)
    gb = jnp.ones((hidden_layer, hidden_node), jnp.float32)
    beb = jnp.zeros((hidden_layer, hidden_node), jnp.float32)

    w_out, b_out = lin(ks[2], hidden_node, out_node)
    return (w_in, b_in, g_in, be_in, wb, bb, gb, beb, w_out, b_out)


def prepare_params(params, *, bn_stats=None, weight_dtype=jnp.bfloat16):
    """One-time transform:
      * fold eval-mode BatchNorm1d into the preceding Linear, using running
        stats (bn_stats = (rm_in, rv_in, rm_blk, rv_blk); default is a fresh
        model: running_mean=0, running_var=1);
      * cast weight matrices to `weight_dtype` (bf16 for the MXU), keep biases f32;
      * zero-pad feature dims to the 128-lane width (padded channels stay
        exactly 0 through every layer because their weights/biases are 0)."""
    (w_in, b_in, g_in, be_in, wb, bb, gb, beb, w_out, b_out) = params
    d_in, hidden = w_in.shape
    n_out = w_out.shape[1]
    num_blocks = wb.shape[0]

    if bn_stats is None:
        rm_in = jnp.zeros((hidden,), jnp.float32)
        rv_in = jnp.ones((hidden,), jnp.float32)
        rm_blk = jnp.zeros((num_blocks, hidden), jnp.float32)
        rv_blk = jnp.ones((num_blocks, hidden), jnp.float32)
    else:
        rm_in, rv_in, rm_blk, rv_blk = bn_stats

    def fold(w, b, gamma, beta, rm, rv):
        scale = gamma / jnp.sqrt(rv + _BN_EPS)
        return w * scale, b * scale + (beta - rm * scale)

    w_in_f, b_in_f = fold(w_in, b_in.reshape(hidden), g_in.reshape(hidden),
                          be_in.reshape(hidden), rm_in, rv_in)

    if num_blocks > 0:
        wb_f, bb_f = fold(wb,
                          bb.reshape(num_blocks, 1, hidden),
                          gb.reshape(num_blocks, 1, hidden),
                          beb.reshape(num_blocks, 1, hidden),
                          rm_blk.reshape(num_blocks, 1, hidden),
                          rv_blk.reshape(num_blocks, 1, hidden))
    else:
        # Mosaic dislikes zero-extent buffers; ship one dummy (unused) block.
        wb_f = jnp.zeros((1, hidden, hidden), jnp.float32)
        bb_f = jnp.zeros((1, 1, hidden), jnp.float32)

    # Hidden/output dims -> 128-lane multiples; input only padded when it is
    # wide and not already lane-aligned (small inputs stay unpadded).
    h_pad = _round_up(hidden, LANE)
    n_pad = _round_up(n_out, LANE)
    d_pad = d_in if (d_in <= LANE or d_in % LANE == 0) else _round_up(d_in, LANE)
    ph, pd, pn = h_pad - hidden, d_pad - d_in, n_pad - n_out

    w_in_p = jnp.pad(w_in_f, ((0, pd), (0, ph))).astype(weight_dtype)
    b_in_p = jnp.pad(b_in_f.reshape(1, hidden), ((0, 0), (0, ph)))
    wb_p = jnp.pad(wb_f, ((0, 0), (0, ph), (0, ph))).astype(weight_dtype)
    bb_p = jnp.pad(bb_f, ((0, 0), (0, 0), (0, ph)))
    w_out_p = jnp.pad(w_out, ((0, ph), (0, pn))).astype(weight_dtype)
    b_out_p = jnp.pad(b_out.reshape(1, n_out), ((0, 0), (0, pn)))

    prepared = (w_in_p, b_in_p, wb_p, bb_p, w_out_p, b_out_p)
    return prepared, n_out


def _pick_batch_tile(batch, block_batch):
    """Largest sublane-multiple tile <= block_batch minimizing padded batch."""
    b8 = _round_up(batch, SUBLANE)
    cap = max(SUBLANE, min(_round_up(block_batch, SUBLANE), b8))
    best_tb, best_pad = cap, _round_up(b8, cap)
    tb = cap - SUBLANE
    while tb >= SUBLANE:
        pad = _round_up(b8, tb)
        if pad < best_pad:
            best_pad, best_tb = pad, tb
        tb -= SUBLANE
    return best_tb, best_pad


# ----------------------------------------------------------------------------
# Wrapper
# ----------------------------------------------------------------------------
def neuralnet_forward(x, prepared, *, num_blocks, n_out, block_batch=256,
                      force_stream=None, out_dtype=jnp.float32):
    # block_batch=256 fills the 256x256 MXU on v6e/v7x; 128 is fine on v5e.
    # out_dtype=jnp.bfloat16 halves the output writeback (useful on mem-bound v5e).
    w_in, b_in, wb, bb, w_out, b_out = prepared
    batch, d_in = x.shape
    assert d_in >= 2, "Normalization uses unbiased std; needs input_node >= 2"
    d_pad, h_pad = w_in.shape
    n_pad = w_out.shape[1]
    n_blk = wb.shape[0]
    assert d_in <= d_pad

    if d_pad != d_in:
        x = jnp.pad(x, ((0, 0), (0, d_pad - d_in)))

    tb, b_pad = _pick_batch_tile(batch, block_batch)
    if b_pad != batch:
        x = jnp.pad(x, ((0, b_pad - batch), (0, 0)))
    grid = (b_pad // tb,)
    out_itemsize = jnp.dtype(out_dtype).itemsize

    # --- generation-aware VMEM budget --------------------------------------
    vmem_cap = _vmem_capacity_bytes()
    vmem_ceiling = max(min(vmem_cap - 12 * 1024 * 1024, 100 * 1024 * 1024),
                       16 * 1024 * 1024)

    small_w_bytes = sum(int(a.nbytes) for a in (w_in, b_in, bb, w_out, b_out))
    act_bytes = (2 * tb * d_pad * 4                 # x, double-buffered
                 + 2 * tb * n_pad * out_itemsize    # out, double-buffered
                 + 6 * tb * h_pad * 4)              # live activation temps / slack
    resident_need = small_w_bytes + int(wb.nbytes) + act_bytes

    stream_blocks = (num_blocks > 0) and (
        force_stream if force_stream is not None
        else (int(wb.nbytes) > vmem_ceiling // 2 or resident_need > vmem_ceiling))

    if stream_blocks:
        need = (small_w_bytes + 2 * h_pad * h_pad * int(wb.dtype.itemsize)
                + act_bytes)
    else:
        need = resident_need
    vmem_limit = int(min(max(need + 4 * 1024 * 1024, 16 * 1024 * 1024),
                         vmem_ceiling))

    # --- scheduler hints -----------------------------------------------------
    flops = 2 * b_pad * (d_pad * h_pad + num_blocks * h_pad * h_pad + h_pad * n_pad)
    transcendentals = b_pad * n_pad  # softmax exp
    if stream_blocks:
        bytes_accessed = (int(x.nbytes) + b_pad * n_pad * out_itemsize
                          + small_w_bytes + grid[0] * int(wb.nbytes))
    else:
        bytes_accessed = (int(x.nbytes) + b_pad * n_pad * out_itemsize
                          + small_w_bytes + int(wb.nbytes))

    def _call(buffered_weights):
        if buffered_weights:
            # grid-invariant blocks: no point double-buffering them
            def wspec(shape, imap):
                return pl.BlockSpec(shape, imap, pipeline_mode=pl.Buffered(1))
        else:
            def wspec(shape, imap):
                return pl.BlockSpec(shape, imap)

        in_specs = [
            pl.BlockSpec((tb, d_pad), lambda i: (i, 0)),          # x: pipelined
            wspec((d_pad, h_pad), lambda i: (0, 0)),              # VMEM-resident
            wspec((1, h_pad), lambda i: (0, 0)),
            (pl.BlockSpec(memory_space=pl.ANY) if stream_blocks   # wb: HBM stream
             else wspec((n_blk, h_pad, h_pad), lambda i: (0, 0, 0))),
            wspec((n_blk, 1, h_pad), lambda i: (0, 0, 0)),
            wspec((h_pad, n_pad), lambda i: (0, 0)),
            wspec((1, n_pad), lambda i: (0, 0)),
        ]
        if stream_blocks:
            kernel = functools.partial(_nn_kernel_stream, num_blocks=num_blocks,
                                       n_out=n_out, d_in=d_in)
            scratch = [pltpu.VMEM((2, h_pad, h_pad), wb.dtype),
                       pltpu.SemaphoreType.DMA((2,))]
        else:
            kernel = functools.partial(_nn_kernel_resident, num_blocks=num_blocks,
                                       n_out=n_out, d_in=d_in)
            scratch = []

        return pl.pallas_call(
            kernel,
            out_shape=jax.ShapeDtypeStruct((b_pad, n_pad), out_dtype),
            grid=grid,
            in_specs=in_specs,
            out_specs=pl.BlockSpec((tb, n_pad), lambda i: (i, 0)),
            scratch_shapes=scratch,
            compiler_params=pltpu.CompilerParams(
                dimension_semantics=("parallel",),
                vmem_limit_bytes=vmem_limit),
            cost_estimate=pl.CostEstimate(
                flops=int(flops),
                transcendentals=int(transcendentals),
                bytes_accessed=int(bytes_accessed)),
        )(x, w_in, b_in, wb, bb, w_out, b_out)

    try:
        out = _call(buffered_weights=True)
    except Exception:
        # Fallback for JAX versions without BlockSpec(pipeline_mode=...).
        out = _call(buffered_weights=False)

    return out[:batch, :n_out]


# ----------------------------------------------------------------------------
# Pure-JAX references
# ----------------------------------------------------------------------------
def reference_forward(x, params, *, num_blocks):
    """Matches the PyTorch eval-mode forward with f32 unfolded params."""
    (w_in, b_in, g_in, be_in, wb, bb, gb, beb, w_out, b_out) = params
    bn_scale = 1.0 / jnp.sqrt(1.0 + _BN_EPS)   # running_mean=0, running_var=1
    u = jnp.mean(x, axis=-1, keepdims=True)
    z = jnp.std(x, axis=-1, keepdims=True, ddof=1)
    h = (x - u) / (z + _NORM_EPS)
    h = h @ w_in + b_in
    h = g_in * (h * bn_scale) + be_in
    h = jnp.where(h >= 0, h, _LEAKY_SLOPE * h)
    for l in range(num_blocks):
        r = h
        h = h @ wb[l] + bb[l]
        h = gb[l] * (h * bn_scale) + beb[l]
        h = h + r
        h = jnp.where(h >= 0, h, _LEAKY_SLOPE * h)
    logits = h @ w_out + b_out
    return jax.nn.softmax(logits, axis=-1)


def prepared_reference_forward(x, prepared, *, num_blocks, n_out):
    """Same math as the kernel (bf16 weights, f32 accumulation) in plain JAX."""
    w_in, b_in, wb, bb, w_out, b_out = prepared
    d_in = x.shape[1]
    u = jnp.mean(x, axis=-1, keepdims=True)
    z = jnp.std(x, axis=-1, keepdims=True, ddof=1)
    xn = (x - u) / (z + _NORM_EPS)
    if w_in.shape[0] != d_in:
        xn = jnp.pad(xn, ((0, 0), (0, w_in.shape[0] - d_in)))
    h = jnp.dot(xn.astype(w_in.dtype), w_in,
                preferred_element_type=jnp.float32) + b_in
    h = _leaky_relu(h)
    for l in range(num_blocks):
        h = _leaky_relu(jnp.dot(h.astype(wb.dtype), wb[l],
                                preferred_element_type=jnp.float32) + bb[l] + h)
    logits = jnp.dot(h.astype(w_out.dtype), w_out,
                     preferred_element_type=jnp.float32) + b_out
    return jax.nn.softmax(logits[:, :n_out], axis=-1)


if __name__ == "__main__":
    INPUT_NODE = 32
    HIDDEN_LAYER = 2
    HIDDEN_NODE = 32
    BATCH = 8

    key = jax.random.PRNGKey(0)
    kx, kp = jax.random.split(key)
    x = jax.random.normal(kx, (BATCH, INPUT_NODE), jnp.float32)
    params = init_params(kp, INPUT_NODE, HIDDEN_LAYER, HIDDEN_NODE)
    prepared, n_out = prepare_params(params)

    # Resident-weights path (weights fit in VMEM).
    out = neuralnet_forward(x, prepared, num_blocks=HIDDEN_LAYER, n_out=n_out)
    out = jax.block_until_ready(out)
    assert out.shape == (BATCH, 7), out.shape

    ref_prepared = prepared_reference_forward(x, prepared,
                                              num_blocks=HIDDEN_LAYER, n_out=n_out)
    ref_f32 = reference_forward(x, params, num_blocks=HIDDEN_LAYER)
    assert jnp.allclose(jnp.sum(out, axis=-1), 1.0, atol=1e-5)
    assert jnp.allclose(out, ref_prepared, atol=1e-4, rtol=1e-4), (
        float(jnp.max(jnp.abs(out - ref_prepared))))
    # bf16 weights vs full-f32 reference: looser tolerance bounds the drift.
    assert jnp.allclose(out, ref_f32, atol=3e-2), (
        float(jnp.max(jnp.abs(out - ref_f32))))

    # HBM-streamed block-weight path (forced here to exercise the code path
    # that large L*H^2 models take automatically).
    out_s = neuralnet_forward(x, prepared, num_blocks=HIDDEN_LAYER, n_out=n_out,
                              force_stream=True)
    out_s = jax.block_until_ready(out_s)
    assert jnp.allclose(out_s, ref_prepared, atol=1e-4, rtol=1e-4), (
        float(jnp.max(jnp.abs(out_s - ref_prepared))))

    print("KERNEL_OK")
</pallas_src>

<mosaic_0001>
module attributes {stable_mosaic.version = 11 : i64} {
  func.func @_nn_kernel_resident(%arg0: i32, %arg1: memref<8x32xf32, #tpu.memory_space<vmem>>, %arg2: memref<32x128xbf16, #tpu.memory_space<vmem>>, %arg3: memref<1x128xf32, #tpu.memory_space<vmem>>, %arg4: memref<2x128x128xbf16, #tpu.memory_space<vmem>>, %arg5: memref<2x1x128xf32, #tpu.memory_space<vmem>>, %arg6: memref<128x128xbf16, #tpu.memory_space<vmem>>, %arg7: memref<1x128xf32, #tpu.memory_space<vmem>>, %arg8: memref<8x128xf32, #tpu.memory_space<vmem>>) attributes {dimension_semantics = [#tpu.dimension_semantics<parallel>], iteration_bounds = array<i64: 1>, scalar_prefetch = 0 : i64, scratch_operands = 0 : i64, tpu.core_type = #tpu.core_type<tc>, window_params = [{transform_indices = @transform_0, window_bounds = array<i64: 8, 32>}, {pipeline_mode = #tpu.pipeline_mode<synchronous>, transform_indices = @transform_1, window_bounds = array<i64: 32, 128>}, {pipeline_mode = #tpu.pipeline_mode<synchronous>, transform_indices = @transform_2, window_bounds = array<i64: 1, 128>}, {pipeline_mode = #tpu.pipeline_mode<synchronous>, transform_indices = @transform_3, window_bounds = array<i64: 2, 128, 128>}, {pipeline_mode = #tpu.pipeline_mode<synchronous>, transform_indices = @transform_4, window_bounds = array<i64: 2, 1, 128>}, {pipeline_mode = #tpu.pipeline_mode<synchronous>, transform_indices = @transform_5, window_bounds = array<i64: 128, 128>}, {pipeline_mode = #tpu.pipeline_mode<synchronous>, transform_indices = @transform_6, window_bounds = array<i64: 1, 128>}, {transform_indices = @transform_7, window_bounds = array<i64: 8, 128>}]} {
    %c0 = arith.constant 0 : index
    %c0_0 = arith.constant 0 : index
    %0 = vector.load %arg1[%c0, %c0_0] : memref<8x32xf32, #tpu.memory_space<vmem>>, vector<8x32xf32>
    %cst = arith.constant dense<0.000000e+00> : vector<8xf32>
    %1 = vector.multi_reduction <add>, %0, %cst [1] : vector<8x32xf32> to vector<8xf32>
    %2 = vector.shape_cast %1 : vector<8xf32> to vector<8x1xf32>
    %cst_1 = arith.constant 3.125000e-02 : f32
    %3 = vector.broadcast %cst_1 : f32 to vector<8x1xf32>
    %4 = arith.mulf %2, %3 : vector<8x1xf32>
    %5 = vector.broadcast %4 : vector<8x1xf32> to vector<8x32xf32>
    %6 = arith.subf %0, %5 : vector<8x32xf32>
    %7 = arith.mulf %6, %6 : vector<8x32xf32>
    %cst_2 = arith.constant dense<0.000000e+00> : vector<8xf32>
    %8 = vector.multi_reduction <add>, %7, %cst_2 [1] : vector<8x32xf32> to vector<8xf32>
    %9 = vector.shape_cast %8 : vector<8xf32> to vector<8x1xf32>
    %cst_3 = arith.constant 0.0322580636 : f32
    %10 = vector.broadcast %cst_3 : f32 to vector<8x1xf32>
    %11 = arith.mulf %9, %10 : vector<8x1xf32>
    %12 = math.sqrt %11 : vector<8x1xf32>
    %cst_4 = arith.constant 9.99999996E-13 : f32
    %13 = vector.broadcast %cst_4 : f32 to vector<8x1xf32>
    %14 = arith.addf %12, %13 : vector<8x1xf32>
    %15 = vector.broadcast %14 : vector<8x1xf32> to vector<8x32xf32>
    %16 = arith.divf %6, %15 : vector<8x32xf32>
    %17 = arith.truncf %16 : vector<8x32xf32> to vector<8x32xbf16>
    %c0_5 = arith.constant 0 : index
    %c0_6 = arith.constant 0 : index
    %18 = vector.load %arg2[%c0_5, %c0_6] : memref<32x128xbf16, #tpu.memory_space<vmem>>, vector<32x128xbf16>
    %cst_7 = arith.constant dense<0.000000e+00> : vector<8x128xf32>
    %19 = tpu.matmul %17, %18, %cst_7 {dimension_numbers = #tpu.dot_dimension_numbers<[1], [0], [0], [1], [0, 0, 1, 1], [], []>} : vector<8x32xbf16>, vector<32x128xbf16>, vector<8x128xf32> -> vector<8x128xf32>
    %c0_8 = arith.constant 0 : index
    %c0_9 = arith.constant 0 : index
    %20 = vector.load %arg3[%c0_8, %c0_9] : memref<1x128xf32, #tpu.memory_space<vmem>>, vector<1x128xf32>
    %21 = vector.broadcast %20 : vector<1x128xf32> to vector<8x128xf32>
    %22 = arith.addf %19, %21 : vector<8x128xf32>
    %cst_10 = arith.constant 0.000000e+00 : f32
    %23 = vector.broadcast %cst_10 : f32 to vector<8x128xf32>
    %24 = arith.cmpf oge, %22, %23 : vector<8x128xf32>
    %cst_11 = arith.constant 0.00999999977 : f32
    %25 = vector.broadcast %cst_11 : f32 to vector<8x128xf32>
    %26 = arith.mulf %25, %22 : vector<8x128xf32>
    %27 = arith.select %24, %22, %26 : vector<8x128xi1>, vector<8x128xf32>
    %28 = arith.truncf %27 : vector<8x128xf32> to vector<8x128xbf16>
    %c0_12 = arith.constant 0 : index
    %c0_13 = arith.constant 0 : index
    %c0_14 = arith.constant 0 : index
    %29 = vector.load %arg4[%c0_12, %c0_13, %c0_14] : memref<2x128x128xbf16, #tpu.memory_space<vmem>>, vector<1x128x128xbf16>
    %30 = vector.shape_cast %29 : vector<1x128x128xbf16> to vector<128x128xbf16>
    %cst_15 = arith.constant dense<0.000000e+00> : vector<8x128xf32>
    %31 = tpu.matmul %28, %30, %cst_15 {dimension_numbers = #tpu.dot_dimension_numbers<[1], [0], [0], [1], [0, 0, 1, 1], [], []>} : vector<8x128xbf16>, vector<128x128xbf16>, vector<8x128xf32> -> vector<8x128xf32>
    %c0_16 = arith.constant 0 : index
    %c0_17 = arith.constant 0 : index
    %c0_18 = arith.constant 0 : index
    %32 = vector.load %arg5[%c0_16, %c0_17, %c0_18] : memref<2x1x128xf32, #tpu.memory_space<vmem>>, vector<1x1x128xf32>
    %33 = vector.shape_cast %32 : vector<1x1x128xf32> to vector<1x128xf32>
    %34 = vector.broadcast %33 : vector<1x128xf32> to vector<8x128xf32>
    %35 = arith.addf %31, %34 : vector<8x128xf32>
    %36 = arith.addf %35, %27 : vector<8x128xf32>
    %cst_19 = arith.constant 0.000000e+00 : f32
    %37 = vector.broadcast %cst_19 : f32 to vector<8x128xf32>
    %38 = arith.cmpf oge, %36, %37 : vector<8x128xf32>
    %cst_20 = arith.constant 0.00999999977 : f32
    %39 = vector.broadcast %cst_20 : f32 to vector<8x128xf32>
    %40 = arith.mulf %39, %36 : vector<8x128xf32>
    %41 = arith.select %38, %36, %40 : vector<8x128xi1>, vector<8x128xf32>
    %42 = arith.truncf %41 : vector<8x128xf32> to vector<8x128xbf16>
    %c1 = arith.constant 1 : index
    %c0_21 = arith.constant 0 : index
    %c0_22 = arith.constant 0 : index
    %43 = vector.load %arg4[%c1, %c0_21, %c0_22] : memref<2x128x128xbf16, #tpu.memory_space<vmem>>, vector<1x128x128xbf16>
    %44 = vector.shape_cast %43 : vector<1x128x128xbf16> to vector<128x128xbf16>
    %cst_23 = arith.constant dense<0.000000e+00> : vector<8x128xf32>
    %45 = tpu.matmul %42, %44, %cst_23 {dimension_numbers = #tpu.dot_dimension_numbers<[1], [0], [0], [1], [0, 0, 1, 1], [], []>} : vector<8x128xbf16>, vector<128x128xbf16>, vector<8x128xf32> -> vector<8x128xf32>
    %c1_24 = arith.constant 1 : index
    %c0_25 = arith.constant 0 : index
    %c0_26 = arith.constant 0 : index
    %46 = vector.load %arg5[%c1_24, %c0_25, %c0_26] : memref<2x1x128xf32, #tpu.memory_space<vmem>>, vector<1x1x128xf32>
    %47 = vector.shape_cast %46 : vector<1x1x128xf32> to vector<1x128xf32>
    %48 = vector.broadcast %47 : vector<1x128xf32> to vector<8x128xf32>
    %49 = arith.addf %45, %48 : vector<8x128xf32>
    %50 = arith.addf %49, %41 : vector<8x128xf32>
    %cst_27 = arith.constant 0.000000e+00 : f32
    %51 = vector.broadcast %cst_27 : f32 to vector<8x128xf32>
    %52 = arith.cmpf oge, %50, %51 : vector<8x128xf32>
    %cst_28 = arith.constant 0.00999999977 : f32
    %53 = vector.broadcast %cst_28 : f32 to vector<8x128xf32>
    %54 = arith.mulf %53, %50 : vector<8x128xf32>
    %55 = arith.select %52, %50, %54 : vector<8x128xi1>, vector<8x128xf32>
    %c0_29 = arith.constant 0 : index
    %c0_30 = arith.constant 0 : index
    %56 = vector.load %arg6[%c0_29, %c0_30] : memref<128x128xbf16, #tpu.memory_space<vmem>>, vector<128x128xbf16>
    %c0_31 = arith.constant 0 : index
    %c0_32 = arith.constant 0 : index
    %57 = vector.load %arg7[%c0_31, %c0_32] : memref<1x128xf32, #tpu.memory_space<vmem>>, vector<1x128xf32>
    %58 = arith.truncf %55 : vector<8x128xf32> to vector<8x128xbf16>
    %cst_33 = arith.constant dense<0.000000e+00> : vector<8x128xf32>
    %59 = tpu.matmul %58, %56, %cst_33 {dimension_numbers = #tpu.dot_dimension_numbers<[1], [0], [0], [1], [0, 0, 1, 1], [], []>} : vector<8x128xbf16>, vector<128x128xbf16>, vector<8x128xf32> -> vector<8x128xf32>
    %60 = vector.broadcast %57 : vector<1x128xf32> to vector<8x128xf32>
    %61 = arith.addf %59, %60 : vector<8x128xf32>
    %62 = tpu.iota {dimensions = array<i32: 1>} : vector<8x128xi32>
    %c7_i32 = arith.constant 7 : i32
    %63 = vector.broadcast %c7_i32 : i32 to vector<8x128xi32>
    %64 = arith.cmpi slt, %62, %63 : vector<8x128xi32>
    %cst_34 = arith.constant -1.000000e+30 : f32
    %65 = vector.broadcast %cst_34 : f32 to vector<8x128xf32>
    %66 = arith.select %64, %61, %65 : vector<8x128xi1>, vector<8x128xf32>
    %cst_35 = arith.constant dense<0xFF800000> : vector<8xf32>
    %67 = vector.multi_reduction <maximumf>, %66, %cst_35 [1] : vector<8x128xf32> to vector<8xf32>
    %68 = vector.shape_cast %67 : vector<8xf32> to vector<8x1xf32>
    %69 = vector.broadcast %68 : vector<8x1xf32> to vector<8x128xf32>
    %70 = arith.subf %66, %69 : vector<8x128xf32>
    %71 = math.exp %70 : vector<8x128xf32>
    %cst_36 = arith.constant dense<0.000000e+00> : vector<8xf32>
    %72 = vector.multi_reduction <add>, %71, %cst_36 [1] : vector<8x128xf32> to vector<8xf32>
    %73 = vector.shape_cast %72 : vector<8xf32> to vector<8x1xf32>
    %74 = tpu.reciprocal %73 {approx = true} : vector<8x1xf32> -> vector<8x1xf32>
    %75 = arith.mulf %73, %74 : vector<8x1xf32>
    %cst_37 = arith.constant 2.000000e+00 : f32
    %76 = vector.broadcast %cst_37 : f32 to vector<8x1xf32>
    %77 = arith.subf %76, %75 : vector<8x1xf32>
    %78 = arith.mulf %74, %77 : vector<8x1xf32>
    %79 = vector.broadcast %78 : vector<8x1xf32> to vector<8x128xf32>
    %80 = arith.mulf %71, %79 : vector<8x128xf32>
    %c0_38 = arith.constant 0 : index
    %c0_39 = arith.constant 0 : index
    %81 = vector.load %arg8[%c0_38, %c0_39] : memref<8x128xf32, #tpu.memory_space<vmem>>, vector<8x128xf32>
    tpu.vector_store %arg8[%c0_38, %c0_39], %80 {strides = array<i32>} : memref<8x128xf32, #tpu.memory_space<vmem>>, vector<8x128xf32>,
    return
  }
  func.func @transform_0(%arg0: i32) -> (i32, i32) {
    %c0_i32 = arith.constant 0 : i32
    %c0_i32_0 = arith.constant 0 : i32
    return %arg0, %c0_i32 : i32, i32
  }
  func.func @transform_1(%arg0: i32) -> (i32, i32) {
    %c0_i32 = arith.constant 0 : i32
    %c0_i32_0 = arith.constant 0 : i32
    %c0_i32_1 = arith.constant 0 : i32
    return %c0_i32, %c0_i32_0 : i32, i32
  }
  func.func @transform_2(%arg0: i32) -> (i32, i32) {
    %c0_i32 = arith.constant 0 : i32
    %c0_i32_0 = arith.constant 0 : i32
    %c0_i32_1 = arith.constant 0 : i32
    return %c0_i32, %c0_i32_0 : i32, i32
  }
  func.func @transform_3(%arg0: i32) -> (i32, i32, i32) {
    %c0_i32 = arith.constant 0 : i32
    %c0_i32_0 = arith.constant 0 : i32
    %c0_i32_1 = arith.constant 0 : i32
    %c0_i32_2 = arith.constant 0 : i32
    return %c0_i32, %c0_i32_0, %c0_i32_1 : i32, i32, i32
  }
  func.func @transform_4(%arg0: i32) -> (i32, i32, i32) {
    %c0_i32 = arith.constant 0 : i32
    %c0_i32_0 = arith.constant 0 : i32
    %c0_i32_1 = arith.constant 0 : i32
    %c0_i32_2 = arith.constant 0 : i32
    return %c0_i32, %c0_i32_0, %c0_i32_1 : i32, i32, i32
  }
  func.func @transform_5(%arg0: i32) -> (i32, i32) {
    %c0_i32 = arith.constant 0 : i32
    %c0_i32_0 = arith.constant 0 : i32
    %c0_i32_1 = arith.constant 0 : i32
    return %c0_i32, %c0_i32_0 : i32, i32
  }
  func.func @transform_6(%arg0: i32) -> (i32, i32) {
    %c0_i32 = arith.constant 0 : i32
    %c0_i32_0 = arith.constant 0 : i32
    %c0_i32_1 = arith.constant 0 : i32
    return %c0_i32, %c0_i32_0 : i32, i32
  }
  func.func @transform_7(%arg0: i32) -> (i32, i32) {
    %c0_i32 = arith.constant 0 : i32
    %c0_i32_0 = arith.constant 0 : i32
    return %arg0, %c0_i32 : i32, i32
  }
}

module attributes {stable_mosaic.version = 11 : i64} {
  func.func @_nn_kernel_resident(%arg0: i32, %arg1: memref<8x32xf32, #tpu.memory_space<vmem>>, %arg2: memref<32x128xbf16, #tpu.memory_space<vmem>>, %arg3: memref<1x128xf32, #tpu.memory_space<vmem>>, %arg4: memref<2x128x128xbf16, #tpu.memory_space<vmem>>, %arg5: memref<2x1x128xf32, #tpu.memory_space<vmem>>, %arg6: memref<128x128xbf16, #tpu.memory_space<vmem>>, %arg7: memref<1x128xf32, #tpu.memory_space<vmem>>, %arg8: memref<8x128xf32, #tpu.memory_space<vmem>>) attributes {dimension_semantics = [#tpu.dimension_semantics<parallel>], iteration_bounds = array<i64: 1>, scalar_prefetch = 0 : i64, scratch_operands = 0 : i64, tpu.core_type = #tpu.core_type<tc>, window_params = [{transform_indices = @transform_0, window_bounds = array<i64: 8, 32>}, {pipeline_mode = #tpu.pipeline_mode<synchronous>, transform_indices = @transform_1, window_bounds = array<i64: 32, 128>}, {pipeline_mode = #tpu.pipeline_mode<synchronous>, transform_indices = @transform_2, window_bounds = array<i64: 1, 128>}, {pipeline_mode = #tpu.pipeline_mode<synchronous>, transform_indices = @transform_3, window_bounds = array<i64: 2, 128, 128>}, {pipeline_mode = #tpu.pipeline_mode<synchronous>, transform_indices = @transform_4, window_bounds = array<i64: 2, 1, 128>}, {pipeline_mode = #tpu.pipeline_mode<synchronous>, transform_indices = @transform_5, window_bounds = array<i64: 128, 128>}, {pipeline_mode = #tpu.pipeline_mode<synchronous>, transform_indices = @transform_6, window_bounds = array<i64: 1, 128>}, {transform_indices = @transform_7, window_bounds = array<i64: 8, 128>}]} {
    %c0 = arith.constant 0 : index
    %c0_0 = arith.constant 0 : index
    %0 = vector.load %arg1[%c0, %c0_0] : memref<8x32xf32, #tpu.memory_space<vmem>>, vector<8x32xf32>
    %cst = arith.constant dense<0.000000e+00> : vector<8xf32>
    %1 = vector.multi_reduction <add>, %0, %cst [1] : vector<8x32xf32> to vector<8xf32>
    %2 = vector.shape_cast %1 : vector<8xf32> to vector<8x1xf32>
    %cst_1 = arith.constant 3.125000e-02 : f32
    %3 = vector.broadcast %cst_1 : f32 to vector<8x1xf32>
    %4 = arith.mulf %2, %3 : vector<8x1xf32>
    %5 = vector.broadcast %4 : vector<8x1xf32> to vector<8x32xf32>
    %6 = arith.subf %0, %5 : vector<8x32xf32>
    %7 = arith.mulf %6, %6 : vector<8x32xf32>
    %cst_2 = arith.constant dense<0.000000e+00> : vector<8xf32>
    %8 = vector.multi_reduction <add>, %7, %cst_2 [1] : vector<8x32xf32> to vector<8xf32>
    %9 = vector.shape_cast %8 : vector<8xf32> to vector<8x1xf32>
    %cst_3 = arith.constant 0.0322580636 : f32
    %10 = vector.broadcast %cst_3 : f32 to vector<8x1xf32>
    %11 = arith.mulf %9, %10 : vector<8x1xf32>
    %12 = math.sqrt %11 : vector<8x1xf32>
    %cst_4 = arith.constant 9.99999996E-13 : f32
    %13 = vector.broadcast %cst_4 : f32 to vector<8x1xf32>
    %14 = arith.addf %12, %13 : vector<8x1xf32>
    %15 = vector.broadcast %14 : vector<8x1xf32> to vector<8x32xf32>
    %16 = arith.divf %6, %15 : vector<8x32xf32>
    %17 = arith.truncf %16 : vector<8x32xf32> to vector<8x32xbf16>
    %c0_5 = arith.constant 0 : index
    %c0_6 = arith.constant 0 : index
    %18 = vector.load %arg2[%c0_5, %c0_6] : memref<32x128xbf16, #tpu.memory_space<vmem>>, vector<32x128xbf16>
    %cst_7 = arith.constant dense<0.000000e+00> : vector<8x128xf32>
    %19 = tpu.matmul %17, %18, %cst_7 {dimension_numbers = #tpu.dot_dimension_numbers<[1], [0], [0], [1], [0, 0, 1, 1], [], []>} : vector<8x32xbf16>, vector<32x128xbf16>, vector<8x128xf32> -> vector<8x128xf32>
    %c0_8 = arith.constant 0 : index
    %c0_9 = arith.constant 0 : index
    %20 = vector.load %arg3[%c0_8, %c0_9] : memref<1x128xf32, #tpu.memory_space<vmem>>, vector<1x128xf32>
    %21 = vector.broadcast %20 : vector<1x128xf32> to vector<8x128xf32>
    %22 = arith.addf %19, %21 : vector<8x128xf32>
    %cst_10 = arith.constant 0.000000e+00 : f32
    %23 = vector.broadcast %cst_10 : f32 to vector<8x128xf32>
    %24 = arith.cmpf oge, %22, %23 : vector<8x128xf32>
    %cst_11 = arith.constant 0.00999999977 : f32
    %25 = vector.broadcast %cst_11 : f32 to vector<8x128xf32>
    %26 = arith.mulf %25, %22 : vector<8x128xf32>
    %27 = arith.select %24, %22, %26 : vector<8x128xi1>, vector<8x128xf32>
    %28 = arith.truncf %27 : vector<8x128xf32> to vector<8x128xbf16>
    %c0_12 = arith.constant 0 : index
    %c0_13 = arith.constant 0 : index
    %c0_14 = arith.constant 0 : index
    %29 = vector.load %arg4[%c0_12, %c0_13, %c0_14] : memref<2x128x128xbf16, #tpu.memory_space<vmem>>, vector<1x128x128xbf16>
    %30 = vector.shape_cast %29 : vector<1x128x128xbf16> to vector<128x128xbf16>
    %cst_15 = arith.constant dense<0.000000e+00> : vector<8x128xf32>
    %31 = tpu.matmul %28, %30, %cst_15 {dimension_numbers = #tpu.dot_dimension_numbers<[1], [0], [0], [1], [0, 0, 1, 1], [], []>} : vector<8x128xbf16>, vector<128x128xbf16>, vector<8x128xf32> -> vector<8x128xf32>
    %c0_16 = arith.constant 0 : index
    %c0_17 = arith.constant 0 : index
    %c0_18 = arith.constant 0 : index
    %32 = vector.load %arg5[%c0_16, %c0_17, %c0_18] : memref<2x1x128xf32, #tpu.memory_space<vmem>>, vector<1x1x128xf32>
    %33 = vector.shape_cast %32 : vector<1x1x128xf32> to vector<1x128xf32>
    %34 = vector.broadcast %33 : vector<1x128xf32> to vector<8x128xf32>
    %35 = arith.addf %31, %34 : vector<8x128xf32>
    %36 = arith.addf %35, %27 : vector<8x128xf32>
    %cst_19 = arith.constant 0.000000e+00 : f32
    %37 = vector.broadcast %cst_19 : f32 to vector<8x128xf32>
    %38 = arith.cmpf oge, %36, %37 : vector<8x128xf32>
    %cst_20 = arith.constant 0.00999999977 : f32
    %39 = vector.broadcast %cst_20 : f32 to vector<8x128xf32>
    %40 = arith.mulf %39, %36 : vector<8x128xf32>
    %41 = arith.select %38, %36, %40 : vector<8x128xi1>, vector<8x128xf32>
    %42 = arith.truncf %41 : vector<8x128xf32> to vector<8x128xbf16>
    %c1 = arith.constant 1 : index
    %c0_21 = arith.constant 0 : index
    %c0_22 = arith.constant 0 : index
    %43 = vector.load %arg4[%c1, %c0_21, %c0_22] : memref<2x128x128xbf16, #tpu.memory_space<vmem>>, vector<1x128x128xbf16>
    %44 = vector.shape_cast %43 : vector<1x128x128xbf16> to vector<128x128xbf16>
    %cst_23 = arith.constant dense<0.000000e+00> : vector<8x128xf32>
    %45 = tpu.matmul %42, %44, %cst_23 {dimension_numbers = #tpu.dot_dimension_numbers<[1], [0], [0], [1], [0, 0, 1, 1], [], []>} : vector<8x128xbf16>, vector<128x128xbf16>, vector<8x128xf32> -> vector<8x128xf32>
    %c1_24 = arith.constant 1 : index
    %c0_25 = arith.constant 0 : index
    %c0_26 = arith.constant 0 : index
    %46 = vector.load %arg5[%c1_24, %c0_25, %c0_26] : memref<2x1x128xf32, #tpu.memory_space<vmem>>, vector<1x1x128xf32>
    %47 = vector.shape_cast %46 : vector<1x1x128xf32> to vector<1x128xf32>
    %48 = vector.broadcast %47 : vector<1x128xf32> to vector<8x128xf32>
    %49 = arith.addf %45, %48 : vector<8x128xf32>
    %50 = arith.addf %49, %41 : vector<8x128xf32>
    %cst_27 = arith.constant 0.000000e+00 : f32
    %51 = vector.broadcast %cst_27 : f32 to vector<8x128xf32>
    %52 = arith.cmpf oge, %50, %51 : vector<8x128xf32>
    %cst_28 = arith.constant 0.00999999977 : f32
    %53 = vector.broadcast %cst_28 : f32 to vector<8x128xf32>
    %54 = arith.mulf %53, %50 : vector<8x128xf32>
    %55 = arith.select %52, %50, %54 : vector<8x128xi1>, vector<8x128xf32>
    %c0_29 = arith.constant 0 : index
    %c0_30 = arith.constant 0 : index
    %56 = vector.load %arg6[%c0_29, %c0_30] : memref<128x128xbf16, #tpu.memory_space<vmem>>, vector<128x128xbf16>
    %c0_31 = arith.constant 0 : index
    %c0_32 = arith.constant 0 : index
    %57 = vector.load %arg7[%c0_31, %c0_32] : memref<1x128xf32, #tpu.memory_space<vmem>>, vector<1x128xf32>
    %58 = arith.truncf %55 : vector<8x128xf32> to vector<8x128xbf16>
    %cst_33 = arith.constant dense<0.000000e+00> : vector<8x128xf32>
    %59 = tpu.matmul %58, %56, %cst_33 {dimension_numbers = #tpu.dot_dimension_numbers<[1], [0], [0], [1], [0, 0, 1, 1], [], []>} : vector<8x128xbf16>, vector<128x128xbf16>, vector<8x128xf32> -> vector<8x128xf32>
    %60 = vector.broadcast %57 : vector<1x128xf32> to vector<8x128xf32>
    %61 = arith.addf %59, %60 : vector<8x128xf32>
    %62 = tpu.iota {dimensions = array<i32: 1>} : vector<8x128xi32>
    %c7_i32 = arith.constant 7 : i32
    %63 = vector.broadcast %c7_i32 : i32 to vector<8x128xi32>
    %64 = arith.cmpi slt, %62, %63 : vector<8x128xi32>
    %cst_34 = arith.constant -1.000000e+30 : f32
    %65 = vector.broadcast %cst_34 : f32 to vector<8x128xf32>
    %66 = arith.select %64, %61, %65 : vector<8x128xi1>, vector<8x128xf32>
    %cst_35 = arith.constant dense<0xFF800000> : vector<8xf32>
    %67 = vector.multi_reduction <maximumf>, %66, %cst_35 [1] : vector<8x128xf32> to vector<8xf32>
    %68 = vector.shape_cast %67 : vector<8xf32> to vector<8x1xf32>
    %69 = vector.broadcast %68 : vector<8x1xf32> to vector<8x128xf32>
    %70 = arith.subf %66, %69 : vector<8x128xf32>
    %71 = math.exp %70 : vector<8x128xf32>
    %cst_36 = arith.constant dense<0.000000e+00> : vector<8xf32>
    %72 = vector.multi_reduction <add>, %71, %cst_36 [1] : vector<8x128xf32> to vector<8xf32>
    %73 = vector.shape_cast %72 : vector<8xf32> to vector<8x1xf32>
    %74 = tpu.reciprocal %73 {approx = true} : vector<8x1xf32> -> vector<8x1xf32>
    %75 = arith.mulf %73, %74 : vector<8x1xf32>
    %cst_37 = arith.constant 2.000000e+00 : f32
    %76 = vector.broadcast %cst_37 : f32 to vector<8x1xf32>
    %77 = arith.subf %76, %75 : vector<8x1xf32>
    %78 = arith.mulf %74, %77 : vector<8x1xf32>
    %79 = vector.broadcast %78 : vector<8x1xf32> to vector<8x128xf32>
    %80 = arith.mulf %71, %79 : vector<8x128xf32>
    %c0_38 = arith.constant 0 : index
    %c0_39 = arith.constant 0 : index
    %81 = vector.load %arg8[%c0_38, %c0_39] : memref<8x128xf32, #tpu.memory_space<vmem>>, vector<8x128xf32>
    tpu.vector_store %arg8[%c0_38, %c0_39], %80 {strides = array<i32>} : memref<8x128xf32, #tpu.memory_space<vmem>>, vector<8x128xf32>,
    return
  }
  func.func @transform_0(%arg0: i32) -> (i32, i32) {
    %c0_i32 = arith.constant 0 : i32
    %c0_i32_0 = arith.constant 0 : i32
    return %arg0, %c0_i32 : i32, i32
  }
  func.func @transform_1(%arg0: i32) -> (i32, i32) {
    %c0_i32 = arith.constant 0 : i32
    %c0_i32_0 = arith.constant 0 : i32
    %c0_i32_1 = arith.constant 0 : i32
    return %c0_i32, %c0_i32_0 : i32, i32
  }
  func.func @transform_2(%arg0: i32) -> (i32, i32) {
    %c0_i32 = arith.constant 0 : i32
    %c0_i32_0 = arith.constant 0 : i32
    %c0_i32_1 = arith.constant 0 : i32
    return %c0_i32, %c0_i32_0 : i32, i32
  }
  func.func @transform_3(%arg0: i32) -> (i32, i32, i32) {
    %c0_i32 = arith.constant 0 : i32
    %c0_i32_0 = arith.constant 0 : i32
    %c0_i32_1 = arith.constant 0 : i32
    %c0_i32_2 = arith.constant 0 : i32
    return %c0_i32, %c0_i32_0, %c0_i32_1 : i32, i32, i32
  }
  func.func @transform_4(%arg0: i32) -> (i32, i32, i32) {
    %c0_i32 = arith.constant 0 : i32
    %c0_i32_0 = arith.constant 0 : i32
    %c0_i32_1 = arith.constant 0 : i32
    %c0_i32_2 = arith.constant 0 : i32
    return %c0_i32, %c0_i32_0, %c0_i32_1 : i32, i32, i32
  }
  func.func @transform_5(%arg0: i32) -> (i32, i32) {
    %c0_i32 = arith.constant 0 : i32
    %c0_i32_0 = arith.constant 0 : i32
    %c0_i32_1 = arith.constant 0 : i32
    return %c0_i32, %c0_i32_0 : i32, i32
  }
  func.func @transform_6(%arg0: i32) -> (i32, i32) {
    %c0_i32 = arith.constant 0 : i32
    %c0_i32_0 = arith.constant 0 : i32
    %c0_i32_1 = arith.constant 0 : i32
    return %c0_i32, %c0_i32_0 : i32, i32
  }
  func.func @transform_7(%arg0: i32) -> (i32, i32) {
    %c0_i32 = arith.constant 0 : i32
    %c0_i32_0 = arith.constant 0 : i32
    return %arg0, %c0_i32 : i32, i32
  }
}

</mosaic_0001>

<llo_original>
// kernel: tpu_custom_call.1
$region0: #{tpu_custom_call.1}
  #allocation0 [shape = 'u32[]', space=smem, size = 0x4, offset = 0x4, fixed_abs, tag = 'smem constant byte address 0x4 - core index']
  #allocation1 [shape = 'u32[144,128]{1,0:T(1,128)}', space=vmem, size = 0x12000, scoped, tag = 'internal scratch']
  %s0 = inlined_call_operand.hbm [shape: f32[8,32], index: 0, kind: input, shape index: {}]
  %s1 = inlined_call_operand.hbm [shape: bf16[32,128], index: 1, kind: input, shape index: {}]
  %s2 = inlined_call_operand.vmem [shape: f32[1,128], index: 2, kind: input, shape index: {}]
  %s3 = inlined_call_operand.hbm [shape: bf16[2,128,128], index: 3, kind: input, shape index: {}]
  %s4 = inlined_call_operand.vmem [shape: f32[2,1,128], index: 4, kind: input, shape index: {}]
  %s5 = inlined_call_operand.hbm [shape: bf16[128,128], index: 5, kind: input, shape index: {}]
  %s6 = inlined_call_operand.vmem [shape: f32[1,128], index: 6, kind: input, shape index: {}]
  %s7 = inlined_call_operand.hbm [shape: f32[8,128], index: 7, kind: output, shape index: {}]
  %s8 = sld [smem:[#allocation0]]
  $region54: #{tpu_custom_call.1} parent=0
    _
  %s10 = ssub.s32 1, %s8
  %s11 = scalar_select 0, %s10, %s8
  $region1: #{tpu_custom_call.1} parent=0
    #allocation2 [shape = 'u8[4096]{0}', space=vmem, size = 0x1000, scoped, tag = 'input window, operand 0, single buffered']
    #allocation3 [shape = 's32[1]{0}', space=sflag, size = 0x4, scoped, tag = 'scoped memory for tpu_custom_call.1']
    #allocation4 [shape = 's32[1]{0}', space=sflag, size = 0x4, scoped, tag = 'scoped memory for tpu_custom_call.1']
    #allocation5 [shape = 'u8[8192]{0}', space=vmem, size = 0x2000, scoped, tag = 'input window, operand 1, single buffered']
    #allocation6 [shape = 's32[1]{0}', space=sflag, size = 0x4, scoped, tag = 'scoped memory for tpu_custom_call.1']
    #allocation7 [shape = 'u8[65536]{0}', space=vmem, size = 0x10000, scoped, tag = 'input window, operand 3, single buffered']
    #allocation8 [shape = 'u8[32768]{0}', space=vmem, size = 0x8000, scoped, tag = 'input window, operand 5, single buffered']
    #allocation9 [shape = 's32[1]{0}', space=sflag, size = 0x4, scoped, tag = 'scoped memory for tpu_custom_call.1']
    #allocation10 [shape = 'u8[4096]{0}', space=vmem, size = 0x1000, scoped, tag = 'output window, operand 0, single buffered']
    %12 = vsyncpa [#allocation3], 0
    %13 = vsyncpa [#allocation6], 0
    %14 = vsyncpa [#allocation9], 0
    %15 = vsyncpa [#allocation4], 0
    // Predicated region
    $region2: #{tpu_custom_call.1} parent=1 // pred_check
      _
    $region3: #{tpu_custom_call.1} parent=1 // pred_check_branch
      %17 = sbr.rel (0) target = $region5
    $region4: #{tpu_custom_call.1} parent=1 // pred_region
      %s19 = ssub.s32 128, 128
      %20 = vsyncadd [#allocation3], %s19
      %s22 = sshll.u32 [#allocation2], 4
      %s23 = int_to_ptr.vmem [resolvable:$true] %s22
      %25 = dma.hbm_to_vmem [thread:$0]  %s0, 128, %s23, [#allocation3]
    $region5: #{tpu_custom_call.1} parent=1 // pred_fallthru
      _
    // Predicated region
    $region6: #{tpu_custom_call.1} parent=1 // pred_check
      _
    $region7: #{tpu_custom_call.1} parent=1 // pred_check_branch
      %27 = sbr.rel (0) target = $region9
    $region8: #{tpu_custom_call.1} parent=1 // pred_region
      %s29 = ssub.s32 256, 256
      %30 = vsyncadd [#allocation6], %s29
      %s31 = sshll.u32 [#allocation5], 4
      %s32 = int_to_ptr.vmem [resolvable:$true] %s31
      %37 = dma.hbm_to_vmem [thread:$0]  %s1, 256, %s32, [#allocation6], 64, 64, 4
    $region9: #{tpu_custom_call.1} parent=1 // pred_fallthru
      _
    // Predicated region
    $region10: #{tpu_custom_call.1} parent=1 // pred_check
      _
    $region11: #{tpu_custom_call.1} parent=1 // pred_check_branch
      %39 = sbr.rel (0) target = $region13
    $region12: #{tpu_custom_call.1} parent=1 // pred_region
      _
    $region13: #{tpu_custom_call.1} parent=1 // pred_fallthru
      _
    // Predicated region
    $region14: #{tpu_custom_call.1} parent=1 // pred_check
      _
    $region15: #{tpu_custom_call.1} parent=1 // pred_check_branch
      %41 = sbr.rel (0) target = $region17
    $region16: #{tpu_custom_call.1} parent=1 // pred_region
      %s43 = ssub.s32 2048, 2048
      %44 = vsyncadd [#allocation6], %s43
      %s45 = sshll.u32 [#allocation7], 4
      %s46 = int_to_ptr.vmem [resolvable:$true] %s45
      %51 = dma.hbm_to_vmem [thread:$0]  %s3, 2048, %s46, [#allocation6], 64, 64, 4
    $region17: #{tpu_custom_call.1} parent=1 // pred_fallthru
      _
    // Predicated region
    $region18: #{tpu_custom_call.1} parent=1 // pred_check
      _
    $region19: #{tpu_custom_call.1} parent=1 // pred_check_branch
      %53 = sbr.rel (0) target = $region21
    $region20: #{tpu_custom_call.1} parent=1 // pred_region
      _
    $region21: #{tpu_custom_call.1} parent=1 // pred_fallthru
      _
    // Predicated region
    $region22: #{tpu_custom_call.1} parent=1 // pred_check
      _
    $region23: #{tpu_custom_call.1} parent=1 // pred_check_branch
      %55 = sbr.rel (0) target = $region25
    $region24: #{tpu_custom_call.1} parent=1 // pred_region
      %s57 = ssub.s32 1024, 1024
      %58 = vsyncadd [#allocation9], %s57
      %s59 = sshll.u32 [#allocation8], 4
      %s60 = int_to_ptr.vmem [resolvable:$true] %s59
      %65 = dma.hbm_to_vmem [thread:$0]  %s5, 1024, %s60, [#allocation9], 64, 64, 4
    $region25: #{tpu_custom_call.1} parent=1 // pred_fallthru
      _
    // Predicated region
    $region26: #{tpu_custom_call.1} parent=1 // pred_check
      _
    $region27: #{tpu_custom_call.1} parent=1 // pred_check_branch
      %67 = sbr.rel (0) target = $region29
    $region28: #{tpu_custom_call.1} parent=1 // pred_region
      _
    $region29: #{tpu_custom_call.1} parent=1 // pred_fallthru
      _
    // Predicated region
    $region30: #{tpu_custom_call.1} parent=1 // pred_check
      _
    $region31: #{tpu_custom_call.1} parent=1 // pred_check_branch
      %69 = sbr.rel (0) target = $region33
    $region32: #{tpu_custom_call.1} parent=1 // pred_region
      %70 = dma.done [#allocation3], 128
    $region33: #{tpu_custom_call.1} parent=1 // pred_fallthru
      _
    // Predicated region
    $region34: #{tpu_custom_call.1} parent=1 // pred_check
      _
    $region35: #{tpu_custom_call.1} parent=1 // pred_check_branch
      %72 = sbr.rel (0) target = $region37
    $region36: #{tpu_custom_call.1} parent=1 // pred_region
      %73 = dma.done [#allocation6], 256
    $region37: #{tpu_custom_call.1} parent=1 // pred_fallthru
      _
    // Predicated region
    $region38: #{tpu_custom_call.1} parent=1 // pred_check
      _
    $region39: #{tpu_custom_call.1} parent=1 // pred_check_branch
      %75 = sbr.rel (0) target = $region41
    $region40: #{tpu_custom_call.1} parent=1 // pred_region
      %76 = dma.done [#allocation6], 2048
    $region41: #{tpu_custom_call.1} parent=1 // pred_fallthru
      _
    // Predicated region
    $region42: #{tpu_custom_call.1} parent=1 // pred_check
      _
    $region43: #{tpu_custom_call.1} parent=1 // pred_check_branch
      %78 = sbr.rel (0) target = $region45
    $region44: #{tpu_custom_call.1} parent=1 // pred_region
      %79 = dma.done [#allocation9], 1024
    $region45: #{tpu_custom_call.1} parent=1 // pred_fallthru
      _
    %v81 = vld [vmem:[#allocation2] sm:$0xff]
    %vm82 = vcmask 261120
    %v83 = vsel %vm82, %v81, 0.0
    %84 = vadd.xlane.f32.xlu0 %v83
    %v85 = vpop.xlane.xlu0 %84
    %v86 = vmul.f32 %v85, 0.03125
    %v87 = vsub.f32 %v81, %v86
    %v88 = vmul.f32 %v87, %v87
    %v89 = vsel %vm82, %v88, 0.0
    %90 = vadd.xlane.f32.xlu0 %v89
    %v91 = vpop.xlane.xlu0 %90
    %v92 = vmul.f32 %v91, 0.032258064
    %v93 = vrsqrt.pop %v92
    %v94 = vmul.f32 %v92, %v93
    %vm95 = vcmp.eq.f32.partialorder %v92, inf
    %v96 = vsel %vm95, %v92, %v94
    %vm97 = vcmp.eq.f32.partialorder %v92, 0.0
    %v98 = vand.u32 %v92, 2147483648
    %v99 = vsel %vm97, %v98, %v96
    %v100 = vadd.f32 %v99, 1e-12
    %v101 = vrcp.pop %v100
    %v102 = vmul.f32 %v87, %v101
    %v103 = vpack.c.bf16 %v102, %v102
    %v104 = vld [vmem:[#allocation5] sm:$0xf]
    %v105 = vld [vmem:[#allocation5 + $0x4] sm:$0xf]
    %v106 = vld [vmem:[#allocation5 + $0x8] sm:$0xf]
    %v107 = vld [vmem:[#allocation5 + $0xc] sm:$0xf]
    %v108 = vld [vmem:[%s2] sm:$0x1]
    %v110 = vlaneseq
    %v111 = vshrl.u32 %v110, 7
    %v112 = vsub.s32 0, %v111
    %v113 = vrot.slane %v108, %v112
    %v119 = vunpack.c.l.b16 %v104
    %v120 = vunpack.c.l.b16 %v105
    %v121 = vunpack.c.l.b16 %v106
    %v122 = vunpack.c.l.b16 %v107
    %v123 = vpack.c.b16 %v120, %v119
    %v124 = vpack.c.b16 %v122, %v121
    %v128 = vsel %vm82, %v103, 0
    %130 = vmatprep.subr.bf16.mxu0 0
    %131 = vmatpush1.bf16.msra.mxu0 %v123
    %132 = vmatprep.subr.bf16.mxu0 0
    %133 = vmatpush1.bf16.msra.mxu0 %v124
    %134 = vmatprep.subr.bf16.mxu0 0
    %135 = vmatpush1.bf16.msra.mxu0 0
    %136 = vmatprep.subr.bf16.mxu0 0
    %137 = vmatpush1.bf16.msra.mxu0 0
    %138 = vmatprep.subr.bf16.mxu0 0
    %139 = vmatpush1.bf16.msra.mxu0 0
    %140 = vmatprep.subr.bf16.mxu0 0
    %141 = vmatpush1.bf16.msra.mxu0 0
    %142 = vmatprep.subr.bf16.mxu0 0
    %143 = vmatpush1.bf16.msra.mxu0 0
    %144 = vmatprep.subr.bf16.mxu0 0
    %145 = vmatpush1.bf16.msra.mxu0 0
    %146 = vmatprep.subr.bf16.mxu0 0
    %147 = vmatpush1.bf16.msra.mxu0 0
    %148 = vmatprep.subr.bf16.mxu0 0
    %149 = vmatpush1.bf16.msra.mxu0 0
    %150 = vmatprep.subr.bf16.mxu0 0
    %151 = vmatpush1.bf16.msra.mxu0 0
    %152 = vmatprep.subr.bf16.mxu0 0
    %153 = vmatpush1.bf16.msra.mxu0 0
    %154 = vmatprep.subr.bf16.mxu0 0
    %155 = vmatpush1.bf16.msra.mxu0 0
    %156 = vmatprep.subr.bf16.mxu0 0
    %157 = vmatpush1.bf16.msra.mxu0 0
    %158 = vmatprep.subr.bf16.mxu0 0
    %159 = vmatpush1.bf16.msra.mxu0 0
    %160 = vmatprep.subr.bf16.mxu0 0
    %161 = vmatpush1.bf16.msra.mxu0 0
    %162 = vmatprep.mubr.bf16.mxu0 0
    %163 = vmatmul.mubr.bf16.gmra.mrb[0].mxu0 %v128
    %v164 = vpop.f32.mrb[0].mxu0
    %v165 = vadd.f32 %v113, %v164
    %v166 = vpop.f32.mrb[0].mxu0
    %v167 = vpop.f32.mrb[0].mxu0
    %v168 = vpop.f32.mrb[0].mxu0
    %169 = vdwg.mxu0
    %vm170 = vcmp.ge.f32.partialorder %v165, 0.0
    %v171 = vmul.f32 %v165, 0.01
    %v172 = vsel %vm170, %v165, %v171
    %v173 = vpack.c.bf16 %v172, %v172
    %v174 = vld [vmem:[#allocation7] sm:$0xf]
    %v175 = vld [vmem:[#allocation7 + $0x4] sm:$0xf]
    %v176 = vld [vmem:[#allocation7 + $0x8] sm:$0xf]
    %v177 = vld [vmem:[#allocation7 + $0xc] sm:$0xf]
    %v178 = vld [vmem:[#allocation7 + $0x10] sm:$0xf]
    %v179 = vld [vmem:[#allocation7 + $0x14] sm:$0xf]
    %v180 = vld [vmem:[#allocation7 + $0x18] sm:$0xf]
    %v181 = vld [vmem:[#allocation7 + $0x1c] sm:$0xf]
    %v182 = vld [vmem:[#allocation7 + $0x20] sm:$0xf]
    %v183 = vld [vmem:[#allocation7 + $0x24] sm:$0xf]
    %v184 = vld [vmem:[#allocation7 + $0x28] sm:$0xf]
    %v185 = vld [vmem:[#allocation7 + $0x2c] sm:$0xf]
    %v186 = vld [vmem:[#allocation7 + $0x30] sm:$0xf]
    %v187 = vld [vmem:[#allocation7 + $0x34] sm:$0xf]
    %v188 = vld [vmem:[#allocation7 + $0x38] sm:$0xf]
    %v189 = vld [vmem:[#allocation7 + $0x3c] sm:$0xf]
    %v190 = vld [vmem:[%s4] sm:$0x1]
    %v192 = vlaneseq
    %v193 = vshrl.u32 %v192, 7
    %v194 = vsub.s32 0, %v193
    %v195 = vrot.slane %v190, %v194
    %v213 = vunpack.c.l.b16 %v174
    %v214 = vunpack.c.l.b16 %v175
    %v215 = vunpack.c.l.b16 %v176
    %v216 = vunpack.c.l.b16 %v177
    %v217 = vunpack.c.l.b16 %v178
    %v218 = vunpack.c.l.b16 %v179
    %v219 = vunpack.c.l.b16 %v180
    %v220 = vunpack.c.l.b16 %v181
    %v221 = vunpack.c.l.b16 %v182
    %v222 = vunpack.c.l.b16 %v183
    %v223 = vunpack.c.l.b16 %v184
    %v224 = vunpack.c.l.b16 %v185
    %v225 = vunpack.c.l.b16 %v186
    %v226 = vunpack.c.l.b16 %v187
    %v227 = vunpack.c.l.b16 %v188
    %v228 = vunpack.c.l.b16 %v189
    %v229 = vpack.c.b16 %v214, %v213
    %v230 = vpack.c.b16 %v216, %v215
    %v231 = vpack.c.b16 %v218, %v217
    %v232 = vpack.c.b16 %v220, %v219
    %v233 = vpack.c.b16 %v222, %v221
    %v234 = vpack.c.b16 %v224, %v223
    %v235 = vpack.c.b16 %v226, %v225
    %v236 = vpack.c.b16 %v228, %v227
    %245 = vmatprep.subr.bf16.mxu0 0
    %246 = vmatpush1.bf16.msra.mxu0 %v229
    %247 = vmatprep.subr.bf16.mxu0 0
    %248 = vmatpush1.bf16.msra.mxu0 %v230
    %249 = vmatprep.subr.bf16.mxu0 0
    %250 = vmatpush1.bf16.msra.mxu0 %v231
    %251 = vmatprep.subr.bf16.mxu0 0
    %252 = vmatpush1.bf16.msra.mxu0 %v232
    %253 = vmatprep.subr.bf16.mxu0 0
    %254 = vmatpush1.bf16.msra.mxu0 %v233
    %255 = vmatprep.subr.bf16.mxu0 0
    %256 = vmatpush1.bf16.msra.mxu0 %v234
    %257 = vmatprep.subr.bf16.mxu0 0
    %258 = vmatpush1.bf16.msra.mxu0 %v235
    %259 = vmatprep.subr.bf16.mxu0 0
    %260 = vmatpush1.bf16.msra.mxu0 %v236
    %261 = vmatprep.subr.bf16.mxu0 0
    %262 = vmatpush1.bf16.msra.mxu0 0
    %263 = vmatprep.subr.bf16.mxu0 0
    %264 = vmatpush1.bf16.msra.mxu0 0
    %265 = vmatprep.subr.bf16.mxu0 0
    %266 = vmatpush1.bf16.msra.mxu0 0
    %267 = vmatprep.subr.bf16.mxu0 0
    %268 = vmatpush1.bf16.msra.mxu0 0
    %269 = vmatprep.subr.bf16.mxu0 0
    %270 = vmatpush1.bf16.msra.mxu0 0
    %271 = vmatprep.subr.bf16.mxu0 0
    %272 = vmatpush1.bf16.msra.mxu0 0
    %273 = vmatprep.subr.bf16.mxu0 0
    %274 = vmatpush1.bf16.msra.mxu0 0
    %275 = vmatprep.subr.bf16.mxu0 0
    %276 = vmatpush1.bf16.msra.mxu0 0
    %277 = vmatprep.mubr.bf16.mxu0 0
    %278 = vmatmul.mubr.bf16.gmra.mrb[0].mxu0 %v173
    %v279 = vpop.f32.mrb[0].mxu0
    %v280 = vadd.f32 %v195, %v279
    %v281 = vpop.f32.mrb[0].mxu0
    %v282 = vpop.f32.mrb[0].mxu0
    %v283 = vpop.f32.mrb[0].mxu0
    %284 = vdwg.mxu0
    %v285 = vadd.f32 %v280, %v172
    %vm286 = vcmp.ge.f32.partialorder %v285, 0.0
    %v287 = vmul.f32 %v285, 0.01
    %v288 = vsel %vm286, %v285, %v287
    %v289 = vpack.c.bf16 %v288, %v288
    %s290 = scalar_lea.vmem [#allocation7], 64
    %v291 = vld [vmem:[%s290] sm:$0xf]
    %v292 = vld [vmem:[%s290 + $0x4] sm:$0xf]
    %v293 = vld [vmem:[%s290 + $0x8] sm:$0xf]
    %v294 = vld [vmem:[%s290 + $0xc] sm:$0xf]
    %v295 = vld [vmem:[%s290 + $0x10] sm:$0xf]
    %v296 = vld [vmem:[%s290 + $0x14] sm:$0xf]
    %v297 = vld [vmem:[%s290 + $0x18] sm:$0xf]
    %v298 = vld [vmem:[%s290 + $0x1c] sm:$0xf]
    %v299 = vld [vmem:[%s290 + $0x20] sm:$0xf]
    %v300 = vld [vmem:[%s290 + $0x24] sm:$0xf]
    %v301 = vld [vmem:[%s290 + $0x28] sm:$0xf]
    %v302 = vld [vmem:[%s290 + $0x2c] sm:$0xf]
    %v303 = vld [vmem:[%s290 + $0x30] sm:$0xf]
    %v304 = vld [vmem:[%s290 + $0x34] sm:$0xf]
    %v305 = vld [vmem:[%s290 + $0x38] sm:$0xf]
    %v306 = vld [vmem:[%s290 + $0x3c] sm:$0xf]
    %s307 = scalar_lea.vmem %s4, 1
    %v308 = vld [vmem:[%s307] sm:$0x1]
    %v310 = vlaneseq
    %v311 = vshrl.u32 %v310, 7
    %v312 = vsub.s32 0, %v311
    %v313 = vrot.slane %v308, %v312
    %v331 = vunpack.c.l.b16 %v291
    %v332 = vunpack.c.l.b16 %v292
    %v333 = vunpack.c.l.b16 %v293
    %v334 = vunpack.c.l.b16 %v294
    %v335 = vunpack.c.l.b16 %v295
    %v336 = vunpack.c.l.b16 %v296
    %v337 = vunpack.c.l.b16 %v297
    %v338 = vunpack.c.l.b16 %v298
    %v339 = vunpack.c.l.b16 %v299
    %v340 = vunpack.c.l.b16 %v300
    %v341 = vunpack.c.l.b16 %v301
    %v342 = vunpack.c.l.b16 %v302
    %v343 = vunpack.c.l.b16 %v303
    %v344 = vunpack.c.l.b16 %v304
    %v345 = vunpack.c.l.b16 %v305
    %v346 = vunpack.c.l.b16 %v306
    %v347 = vpack.c.b16 %v332, %v331
    %v348 = vpack.c.b16 %v334, %v333
    %v349 = vpack.c.b16 %v336, %v335
    %v350 = vpack.c.b16 %v338, %v337
    %v351 = vpack.c.b16 %v340, %v339
    %v352 = vpack.c.b16 %v342, %v341
    %v353 = vpack.c.b16 %v344, %v343
    %v354 = vpack.c.b16 %v346, %v345
    %363 = vmatprep.subr.bf16.mxu0 0
    %364 = vmatpush1.bf16.msra.mxu0 %v347
    %365 = vmatprep.subr.bf16.mxu0 0
    %366 = vmatpush1.bf16.msra.mxu0 %v348
    %367 = vmatprep.subr.bf16.mxu0 0
    %368 = vmatpush1.bf16.msra.mxu0 %v349
    %369 = vmatprep.subr.bf16.mxu0 0
    %370 = vmatpush1.bf16.msra.mxu0 %v350
    %371 = vmatprep.subr.bf16.mxu0 0
    %372 = vmatpush1.bf16.msra.mxu0 %v351
    %373 = vmatprep.subr.bf16.mxu0 0
    %374 = vmatpush1.bf16.msra.mxu0 %v352
    %375 = vmatprep.subr.bf16.mxu0 0
    %376 = vmatpush1.bf16.msra.mxu0 %v353
    %377 = vmatprep.subr.bf16.mxu0 0
    %378 = vmatpush1.bf16.msra.mxu0 %v354
    %379 = vmatprep.subr.bf16.mxu0 0
    %380 = vmatpush1.bf16.msra.mxu0 0
    %381 = vmatprep.subr.bf16.mxu0 0
    %382 = vmatpush1.bf16.msra.mxu0 0
    %383 = vmatprep.subr.bf16.mxu0 0
    %384 = vmatpush1.bf16.msra.mxu0 0
    %385 = vmatprep.subr.bf16.mxu0 0
    %386 = vmatpush1.bf16.msra.mxu0 0
    %387 = vmatprep.subr.bf16.mxu0 0
    %388 = vmatpush1.bf16.msra.mxu0 0
    %389 = vmatprep.subr.bf16.mxu0 0
    %390 = vmatpush1.bf16.msra.mxu0 0
    %391 = vmatprep.subr.bf16.mxu0 0
    %392 = vmatpush1.bf16.msra.mxu0 0
    %393 = vmatprep.subr.bf16.mxu0 0
    %394 = vmatpush1.bf16.msra.mxu0 0
    %395 = vmatprep.mubr.bf16.mxu0 0
    %396 = vmatmul.mubr.bf16.gmra.mrb[0].mxu0 %v289
    %v397 = vpop.f32.mrb[0].mxu0
    %v398 = vadd.f32 %v313, %v397
    %v399 = vpop.f32.mrb[0].mxu0
    %v400 = vpop.f32.mrb[0].mxu0
    %v401 = vpop.f32.mrb[0].mxu0
    %402 = vdwg.mxu0
    %v403 = vadd.f32 %v398, %v288
    %vm404 = vcmp.ge.f32.partialorder %v403, 0.0
    %v405 = vmul.f32 %v403, 0.01
    %v406 = vsel %vm404, %v403, %v405
    %v407 = vld [vmem:[#allocation8] sm:$0xf]
    %v408 = vld [vmem:[#allocation8 + $0x4] sm:$0xf]
    %v409 = vld [vmem:[#allocation8 + $0x8] sm:$0xf]
    %v410 = vld [vmem:[#allocation8 + $0xc] sm:$0xf]
    %v411 = vld [vmem:[#allocation8 + $0x10] sm:$0xf]
    %v412 = vld [vmem:[#allocation8 + $0x14] sm:$0xf]
    %v413 = vld [vmem:[#allocation8 + $0x18] sm:$0xf]
    %v414 = vld [vmem:[#allocation8 + $0x1c] sm:$0xf]
    %v415 = vld [vmem:[#allocation8 + $0x20] sm:$0xf]
    %v416 = vld [vmem:[#allocation8 + $0x24] sm:$0xf]
    %v417 = vld [vmem:[#allocation8 + $0x28] sm:$0xf]
    %v418 = vld [vmem:[#allocation8 + $0x2c] sm:$0xf]
    %v419 = vld [vmem:[#allocation8 + $0x30] sm:$0xf]
    %v420 = vld [vmem:[#allocation8 + $0x34] sm:$0xf]
    %v421 = vld [vmem:[#allocation8 + $0x38] sm:$0xf]
    %v422 = vld [vmem:[#allocation8 + $0x3c] sm:$0xf]
    %v423 = vld [vmem:[%s6] sm:$0x1]
    %v424 = vpack.c.bf16 %v406, %v406
    %v426 = vlaneseq
    %v427 = vshrl.u32 %v426, 7
    %v428 = vsub.s32 0, %v427
    %v429 = vrot.slane %v423, %v428
    %v447 = vunpack.c.l.b16 %v407
    %v448 = vunpack.c.l.b16 %v408
    %v449 = vunpack.c.l.b16 %v409
    %v450 = vunpack.c.l.b16 %v410
    %v451 = vunpack.c.l.b16 %v411
    %v452 = vunpack.c.l.b16 %v412
    %v453 = vunpack.c.l.b16 %v413
    %v454 = vunpack.c.l.b16 %v414
    %v455 = vunpack.c.l.b16 %v415
    %v456 = vunpack.c.l.b16 %v416
    %v457 = vunpack.c.l.b16 %v417
    %v458 = vunpack.c.l.b16 %v418
    %v459 = vunpack.c.l.b16 %v419
    %v460 = vunpack.c.l.b16 %v420
    %v461 = vunpack.c.l.b16 %v421
    %v462 = vunpack.c.l.b16 %v422
    %v463 = vpack.c.b16 %v448, %v447
    %v464 = vpack.c.b16 %v450, %v449
    %v465 = vpack.c.b16 %v452, %v451
    %v466 = vpack.c.b16 %v454, %v453
    %v467 = vpack.c.b16 %v456, %v455
    %v468 = vpack.c.b16 %v458, %v457
    %v469 = vpack.c.b16 %v460, %v459
    %v470 = vpack.c.b16 %v462, %v461
    %479 = vmatprep.subr.bf16.mxu0 0
    %480 = vmatpush1.bf16.msra.mxu0 %v463
    %481 = vmatprep.subr.bf16.mxu0 0
    %482 = vmatpush1.bf16.msra.mxu0 %v464
    %483 = vmatprep.subr.bf16.mxu0 0
    %484 = vmatpush1.bf16.msra.mxu0 %v465
    %485 = vmatprep.subr.bf16.mxu0 0
    %486 = vmatpush1.bf16.msra.mxu0 %v466
    %487 = vmatprep.subr.bf16.mxu0 0
    %488 = vmatpush1.bf16.msra.mxu0 %v467
    %489 = vmatprep.subr.bf16.mxu0 0
    %490 = vmatpush1.bf16.msra.mxu0 %v468
    %491 = vmatprep.subr.bf16.mxu0 0
    %492 = vmatpush1.bf16.msra.mxu0 %v469
    %493 = vmatprep.subr.bf16.mxu0 0
    %494 = vmatpush1.bf16.msra.mxu0 %v470
    %495 = vmatprep.subr.bf16.mxu0 0
    %496 = vmatpush1.bf16.msra.mxu0 0
    %497 = vmatprep.subr.bf16.mxu0 0
    %498 = vmatpush1.bf16.msra.mxu0 0
    %499 = vmatprep.subr.bf16.mxu0 0
    %500 = vmatpush1.bf16.msra.mxu0 0
    %501 = vmatprep.subr.bf16.mxu0 0
    %502 = vmatpush1.bf16.msra.mxu0 0
    %503 = vmatprep.subr.bf16.mxu0 0
    %504 = vmatpush1.bf16.msra.mxu0 0
    %505 = vmatprep.subr.bf16.mxu0 0
    %506 = vmatpush1.bf16.msra.mxu0 0
    %507 = vmatprep.subr.bf16.mxu0 0
    %508 = vmatpush1.bf16.msra.mxu0 0
    %509 = vmatprep.subr.bf16.mxu0 0
    %510 = vmatpush1.bf16.msra.mxu0 0
    %511 = vmatprep.mubr.bf16.mxu0 0
    %512 = vmatmul.mubr.bf16.gmra.mrb[0].mxu0 %v424
    %v513 = vpop.f32.mrb[0].mxu0
    %v514 = vadd.f32 %v429, %v513
    %v515 = vpop.f32.mrb[0].mxu0
    %v516 = vpop.f32.mrb[0].mxu0
    %v517 = vpop.f32.mrb[0].mxu0
    %518 = vdwg.mxu0
    %v519 = vlaneseq
    %v520 = vand.u32 %v519, 127
    %vm521 = vcmp.lt.s32.totalorder %v520, 7
    %v522 = vsel %vm521, %v514, -1e+30
    %523 = vmax.xlane.f32.xlu0 %v522
    %v524 = vpop.xlane.xlu0 %523
    %v525 = vsub.f32 %v522, %v524
    %v526 = vmul.f32 %v525, 1.442695
    %v527 = vpow.pop %v526
    %528 = vadd.xlane.f32.xlu0 %v527
    %v529 = vpop.xlane.xlu0 %528
    %v530 = vrcp.pop %v529
    %v531 = vmul.f32 %v529, %v530
    %v532 = vsub.f32 2.0, %v531
    %v533 = vmul.f32 %v530, %v532
    %v534 = vmul.f32 %v527, %v533
    %535 = vst [vmem:[#allocation10] sm:$0xff] %v534
    // Predicated region
    $region46: #{tpu_custom_call.1} parent=1 // pred_check
      _
    $region47: #{tpu_custom_call.1} parent=1 // pred_check_branch
      %537 = sbr.rel (0) target = $region49
    $region48: #{tpu_custom_call.1} parent=1 // pred_region
      %s539 = ssub.s32 128, 128
      %540 = vsyncadd [#allocation4], %s539
      %s542 = sshll.u32 [#allocation10], 4
      %s543 = int_to_ptr.vmem [resolvable:$true] %s542
      %545 = dma.vmem_to_hbm [thread:$0]  %s543, 128, %s7, [#allocation4]
    $region49: #{tpu_custom_call.1} parent=1 // pred_fallthru
      _
    // Predicated region
    $region50: #{tpu_custom_call.1} parent=1 // pred_check
      _
    $region51: #{tpu_custom_call.1} parent=1 // pred_check_branch
      %547 = sbr.rel (0) target = $region53
    $region52: #{tpu_custom_call.1} parent=1 // pred_region
      %548 = dma.done [#allocation4], 128
    $region53: #{tpu_custom_call.1} parent=1 // pred_fallthru
      _
    %549 = vsyncpa [#allocation3], 1
    %550 = vsyncpa [#allocation6], 1
    %551 = vsyncpa [#allocation9], 1
    %552 = vsyncpa [#allocation4], 1

// kernel: tpu_custom_call.1
$region0: #{tpu_custom_call.1}
  #allocation0 [shape = 'u32[]', space=smem, size = 0x4, offset = 0x4, fixed_abs, tag = 'smem constant byte address 0x4 - core index']
  #allocation1 [shape = 'u32[144,128]{1,0:T(1,128)}', space=vmem, size = 0x12000, scoped, tag = 'internal scratch']
  %s0 = inlined_call_operand.hbm [shape: f32[8,32], index: 0, kind: input, shape index: {}]
  %s1 = inlined_call_operand.hbm [shape: bf16[32,128], index: 1, kind: input, shape index: {}]
  %s2 = inlined_call_operand.vmem [shape: f32[1,128], index: 2, kind: input, shape index: {}]
  %s3 = inlined_call_operand.hbm [shape: bf16[2,128,128], index: 3, kind: input, shape index: {}]
  %s4 = inlined_call_operand.vmem [shape: f32[2,1,128], index: 4, kind: input, shape index: {}]
  %s5 = inlined_call_operand.hbm [shape: bf16[128,128], index: 5, kind: input, shape index: {}]
  %s6 = inlined_call_operand.vmem [shape: f32[1,128], index: 6, kind: input, shape index: {}]
  %s7 = inlined_call_operand.hbm [shape: f32[8,128], index: 7, kind: output, shape index: {}]
  %s8 = sld [smem:[#allocation0]]
  $region54: #{tpu_custom_call.1} parent=0
    _
  %s10 = ssub.s32 1, %s8
  %s11 = scalar_select 0, %s10, %s8
  $region1: #{tpu_custom_call.1} parent=0
    #allocation2 [shape = 'u8[4096]{0}', space=vmem, size = 0x1000, scoped, tag = 'input window, operand 0, single buffered']
    #allocation3 [shape = 's32[1]{0}', space=sflag, size = 0x4, scoped, tag = 'scoped memory for tpu_custom_call.1']
    #allocation4 [shape = 's32[1]{0}', space=sflag, size = 0x4, scoped, tag = 'scoped memory for tpu_custom_call.1']
    #allocation5 [shape = 'u8[8192]{0}', space=vmem, size = 0x2000, scoped, tag = 'input window, operand 1, single buffered']
    #allocation6 [shape = 's32[1]{0}', space=sflag, size = 0x4, scoped, tag = 'scoped memory for tpu_custom_call.1']
    #allocation7 [shape = 'u8[65536]{0}', space=vmem, size = 0x10000, scoped, tag = 'input window, operand 3, single buffered']
    #allocation8 [shape = 'u8[32768]{0}', space=vmem, size = 0x8000, scoped, tag = 'input window, operand 5, single buffered']
    #allocation9 [shape = 's32[1]{0}', space=sflag, size = 0x4, scoped, tag = 'scoped memory for tpu_custom_call.1']
    #allocation10 [shape = 'u8[4096]{0}', space=vmem, size = 0x1000, scoped, tag = 'output window, operand 0, single buffered']
    %12 = vsyncpa [#allocation3], 0
    %13 = vsyncpa [#allocation6], 0
    %14 = vsyncpa [#allocation9], 0
    %15 = vsyncpa [#allocation4], 0
    // Predicated region
    $region2: #{tpu_custom_call.1} parent=1 // pred_check
      _
    $region3: #{tpu_custom_call.1} parent=1 // pred_check_branch
      %17 = sbr.rel (0) target = $region5
    $region4: #{tpu_custom_call.1} parent=1 // pred_region
      %s19 = ssub.s32 128, 128
      %20 = vsyncadd [#allocation3], %s19
      %s22 = sshll.u32 [#allocation2], 4
      %s23 = int_to_ptr.vmem [resolvable:$true] %s22
      %25 = dma.hbm_to_vmem [thread:$0]  %s0, 128, %s23, [#allocation3]
    $region5: #{tpu_custom_call.1} parent=1 // pred_fallthru
      _
    // Predicated region
    $region6: #{tpu_custom_call.1} parent=1 // pred_check
      _
    $region7: #{tpu_custom_call.1} parent=1 // pred_check_branch
      %27 = sbr.rel (0) target = $region9
    $region8: #{tpu_custom_call.1} parent=1 // pred_region
      %s29 = ssub.s32 256, 256
      %30 = vsyncadd [#allocation6], %s29
      %s31 = sshll.u32 [#allocation5], 4
      %s32 = int_to_ptr.vmem [resolvable:$true] %s31
      %37 = dma.hbm_to_vmem [thread:$0]  %s1, 256, %s32, [#allocation6], 64, 64, 4
    $region9: #{tpu_custom_call.1} parent=1 // pred_fallthru
      _
    // Predicated region
    $region10: #{tpu_custom_call.1} parent=1 // pred_check
      _
    $region11: #{tpu_custom_call.1} parent=1 // pred_check_branch
      %39 = sbr.rel (0) target = $region13
    $region12: #{tpu_custom_call.1} parent=1 // pred_region
      _
    $region13: #{tpu_custom_call.1} parent=1 // pred_fallthru
      _
    // Predicated region
    $region14: #{tpu_custom_call.1} parent=1 // pred_check
      _
    $region15: #{tpu_custom_call.1} parent=1 // pred_check_branch
      %41 = sbr.rel (0) target = $region17
    $region16: #{tpu_custom_call.1} parent=1 // pred_region
      %s43 = ssub.s32 2048, 2048
      %44 = vsyncadd [#allocation6], %s43
      %s45 = sshll.u32 [#allocation7], 4
      %s46 = int_to_ptr.vmem [resolvable:$true] %s45
      %51 = dma.hbm_to_vmem [thread:$0]  %s3, 2048, %s46, [#allocation6], 64, 64, 4
    $region17: #{tpu_custom_call.1} parent=1 // pred_fallthru
      _
    // Predicated region
    $region18: #{tpu_custom_call.1} parent=1 // pred_check
      _
    $region19: #{tpu_custom_call.1} parent=1 // pred_check_branch
      %53 = sbr.rel (0) target = $region21
    $region20: #{tpu_custom_call.1} parent=1 // pred_region
      _
    $region21: #{tpu_custom_call.1} parent=1 // pred_fallthru
      _
    // Predicated region
    $region22: #{tpu_custom_call.1} parent=1 // pred_check
      _
    $region23: #{tpu_custom_call.1} parent=1 // pred_check_branch
      %55 = sbr.rel (0) target = $region25
    $region24: #{tpu_custom_call.1} parent=1 // pred_region
      %s57 = ssub.s32 1024, 1024
      %58 = vsyncadd [#allocation9], %s57
      %s59 = sshll.u32 [#allocation8], 4
      %s60 = int_to_ptr.vmem [resolvable:$true] %s59
      %65 = dma.hbm_to_vmem [thread:$0]  %s5, 1024, %s60, [#allocation9], 64, 64, 4
    $region25: #{tpu_custom_call.1} parent=1 // pred_fallthru
      _
    // Predicated region
    $region26: #{tpu_custom_call.1} parent=1 // pred_check
      _
    $region27: #{tpu_custom_call.1} parent=1 // pred_check_branch
      %67 = sbr.rel (0) target = $region29
    $region28: #{tpu_custom_call.1} parent=1 // pred_region
      _
    $region29: #{tpu_custom_call.1} parent=1 // pred_fallthru
      _
    // Predicated region
    $region30: #{tpu_custom_call.1} parent=1 // pred_check
      _
    $region31: #{tpu_custom_call.1} parent=1 // pred_check_branch
      %69 = sbr.rel (0) target = $region33
    $region32: #{tpu_custom_call.1} parent=1 // pred_region
      %70 = dma.done [#allocation3], 128
    $region33: #{tpu_custom_call.1} parent=1 // pred_fallthru
      _
    // Predicated region
    $region34: #{tpu_custom_call.1} parent=1 // pred_check
      _
    $region35: #{tpu_custom_call.1} parent=1 // pred_check_branch
      %72 = sbr.rel (0) target = $region37
    $region36: #{tpu_custom_call.1} parent=1 // pred_region
      %73 = dma.done [#allocation6], 256
    $region37: #{tpu_custom_call.1} parent=1 // pred_fallthru
      _
    // Predicated region
    $region38: #{tpu_custom_call.1} parent=1 // pred_check
      _
    $region39: #{tpu_custom_call.1} parent=1 // pred_check_branch
      %75 = sbr.rel (0) target = $region41
    $region40: #{tpu_custom_call.1} parent=1 // pred_region
      %76 = dma.done [#allocation6], 2048
    $region41: #{tpu_custom_call.1} parent=1 // pred_fallthru
      _
    // Predicated region
    $region42: #{tpu_custom_call.1} parent=1 // pred_check
      _
    $region43: #{tpu_custom_call.1} parent=1 // pred_check_branch
      %78 = sbr.rel (0) target = $region45
    $region44: #{tpu_custom_call.1} parent=1 // pred_region
      %79 = dma.done [#allocation9], 1024
    $region45: #{tpu_custom_call.1} parent=1 // pred_fallthru
      _
    %v81 = vld [vmem:[#allocation2] sm:$0xff]
    %vm82 = vcmask 261120
    %v83 = vsel %vm82, %v81, 0.0
    %84 = vadd.xlane.f32.xlu0 %v83
    %v85 = vpop.xlane.xlu0 %84
    %v86 = vmul.f32 %v85, 0.03125
    %v87 = vsub.f32 %v81, %v86
    %v88 = vmul.f32 %v87, %v87
    %v89 = vsel %vm82, %v88, 0.0
    %90 = vadd.xlane.f32.xlu0 %v89
    %v91 = vpop.xlane.xlu0 %90
    %v92 = vmul.f32 %v91, 0.032258064
    %v93 = vrsqrt.pop %v92
    %v94 = vmul.f32 %v92, %v93
    %vm95 = vcmp.eq.f32.partialorder %v92, inf
    %v96 = vsel %vm95, %v92, %v94
    %vm97 = vcmp.eq.f32.partialorder %v92, 0.0
    %v98 = vand.u32 %v92, 2147483648
    %v99 = vsel %vm97, %v98, %v96
    %v100 = vadd.f32 %v99, 1e-12
    %v101 = vrcp.pop %v100
    %v102 = vmul.f32 %v87, %v101
    %v103 = vpack.c.bf16 %v102, %v102
    %v104 = vld [vmem:[#allocation5] sm:$0xf]
    %v105 = vld [vmem:[#allocation5 + $0x4] sm:$0xf]
    %v106 = vld [vmem:[#allocation5 + $0x8] sm:$0xf]
    %v107 = vld [vmem:[#allocation5 + $0xc] sm:$0xf]
    %v108 = vld [vmem:[%s2] sm:$0x1]
    %v110 = vlaneseq
    %v111 = vshrl.u32 %v110, 7
    %v112 = vsub.s32 0, %v111
    %v113 = vrot.slane %v108, %v112
    %v119 = vunpack.c.l.b16 %v104
    %v120 = vunpack.c.l.b16 %v105
    %v121 = vunpack.c.l.b16 %v106
    %v122 = vunpack.c.l.b16 %v107
    %v123 = vpack.c.b16 %v120, %v119
    %v124 = vpack.c.b16 %v122, %v121
    %v128 = vsel %vm82, %v103, 0
    %130 = vmatprep.subr.bf16.mxu0 0
    %131 = vmatpush1.bf16.msra.mxu0 %v123
    %132 = vmatprep.subr.bf16.mxu0 0
    %133 = vmatpush1.bf16.msra.mxu0 %v124
    %134 = vmatprep.subr.bf16.mxu0 0
    %135 = vmatpush1.bf16.msra.mxu0 0
    %136 = vmatprep.subr.bf16.mxu0 0
    %137 = vmatpush1.bf16.msra.mxu0 0
    %138 = vmatprep.subr.bf16.mxu0 0
    %139 = vmatpush1.bf16.msra.mxu0 0
    %140 = vmatprep.subr.bf16.mxu0 0
    %141 = vmatpush1.bf16.msra.mxu0 0
    %142 = vmatprep.subr.bf16.mxu0 0
    %143 = vmatpush1.bf16.msra.mxu0 0
    %144 = vmatprep.subr.bf16.mxu0 0
    %145 = vmatpush1.bf16.msra.mxu0 0
    %146 = vmatprep.subr.bf16.mxu0 0
    %147 = vmatpush1.bf16.msra.mxu0 0
    %148 = vmatprep.subr.bf16.mxu0 0
    %149 = vmatpush1.bf16.msra.mxu0 0
    %150 = vmatprep.subr.bf16.mxu0 0
    %151 = vmatpush1.bf16.msra.mxu0 0
    %152 = vmatprep.subr.bf16.mxu0 0
    %153 = vmatpush1.bf16.msra.mxu0 0
    %154 = vmatprep.subr.bf16.mxu0 0
    %155 = vmatpush1.bf16.msra.mxu0 0
    %156 = vmatprep.subr.bf16.mxu0 0
    %157 = vmatpush1.bf16.msra.mxu0 0
    %158 = vmatprep.subr.bf16.mxu0 0
    %159 = vmatpush1.bf16.msra.mxu0 0
    %160 = vmatprep.subr.bf16.mxu0 0
    %161 = vmatpush1.bf16.msra.mxu0 0
    %162 = vmatprep.mubr.bf16.mxu0 0
    %163 = vmatmul.mubr.bf16.gmra.mrb[0].mxu0 %v128
    %v164 = vpop.f32.mrb[0].mxu0
    %v165 = vadd.f32 %v113, %v164
    %v166 = vpop.f32.mrb[0].mxu0
    %v167 = vpop.f32.mrb[0].mxu0
    %v168 = vpop.f32.mrb[0].mxu0
    %169 = vdwg.mxu0
    %vm170 = vcmp.ge.f32.partialorder %v165, 0.0
    %v171 = vmul.f32 %v165, 0.01
    %v172 = vsel %vm170, %v165, %v171
    %v173 = vpack.c.bf16 %v172, %v172
    %v174 = vld [vmem:[#allocation7] sm:$0xf]
    %v175 = vld [vmem:[#allocation7 + $0x4] sm:$0xf]
    %v176 = vld [vmem:[#allocation7 + $0x8] sm:$0xf]
    %v177 = vld [vmem:[#allocation7 + $0xc] sm:$0xf]
    %v178 = vld [vmem:[#allocation7 + $0x10] sm:$0xf]
    %v179 = vld [vmem:[#allocation7 + $0x14] sm:$0xf]
    %v180 = vld [vmem:[#allocation7 + $0x18] sm:$0xf]
    %v181 = vld [vmem:[#allocation7 + $0x1c] sm:$0xf]
    %v182 = vld [vmem:[#allocation7 + $0x20] sm:$0xf]
    %v183 = vld [vmem:[#allocation7 + $0x24] sm:$0xf]
    %v184 = vld [vmem:[#allocation7 + $0x28] sm:$0xf]
    %v185 = vld [vmem:[#allocation7 + $0x2c] sm:$0xf]
    %v186 = vld [vmem:[#allocation7 + $0x30] sm:$0xf]
    %v187 = vld [vmem:[#allocation7 + $0x34] sm:$0xf]
    %v188 = vld [vmem:[#allocation7 + $0x38] sm:$0xf]
    %v189 = vld [vmem:[#allocation7 + $0x3c] sm:$0xf]
    %v190 = vld [vmem:[%s4] sm:$0x1]
    %v192 = vlaneseq
    %v193 = vshrl.u32 %v192, 7
    %v194 = vsub.s32 0, %v193
    %v195 = vrot.slane %v190, %v194
    %v213 = vunpack.c.l.b16 %v174
    %v214 = vunpack.c.l.b16 %v175
    %v215 = vunpack.c.l.b16 %v176
    %v216 = vunpack.c.l.b16 %v177
    %v217 = vunpack.c.l.b16 %v178
    %v218 = vunpack.c.l.b16 %v179
    %v219 = vunpack.c.l.b16 %v180
    %v220 = vunpack.c.l.b16 %v181
    %v221 = vunpack.c.l.b16 %v182
    %v222 = vunpack.c.l.b16 %v183
    %v223 = vunpack.c.l.b16 %v184
    %v224 = vunpack.c.l.b16 %v185
    %v225 = vunpack.c.l.b16 %v186
    %v226 = vunpack.c.l.b16 %v187
    %v227 = vunpack.c.l.b16 %v188
    %v228 = vunpack.c.l.b16 %v189
    %v229 = vpack.c.b16 %v214, %v213
    %v230 = vpack.c.b16 %v216, %v215
    %v231 = vpack.c.b16 %v218, %v217
    %v232 = vpack.c.b16 %v220, %v219
    %v233 = vpack.c.b16 %v222, %v221
    %v234 = vpack.c.b16 %v224, %v223
    %v235 = vpack.c.b16 %v226, %v225
    %v236 = vpack.c.b16 %v228, %v227
    %245 = vmatprep.subr.bf16.mxu0 0
    %246 = vmatpush1.bf16.msra.mxu0 %v229
    %247 = vmatprep.subr.bf16.mxu0 0
    %248 = vmatpush1.bf16.msra.mxu0 %v230
    %249 = vmatprep.subr.bf16.mxu0 0
    %250 = vmatpush1.bf16.msra.mxu0 %v231
    %251 = vmatprep.subr.bf16.mxu0 0
    %252 = vmatpush1.bf16.msra.mxu0 %v232
    %253 = vmatprep.subr.bf16.mxu0 0
    %254 = vmatpush1.bf16.msra.mxu0 %v233
    %255 = vmatprep.subr.bf16.mxu0 0
    %256 = vmatpush1.bf16.msra.mxu0 %v234
    %257 = vmatprep.subr.bf16.mxu0 0
    %258 = vmatpush1.bf16.msra.mxu0 %v235
    %259 = vmatprep.subr.bf16.mxu0 0
    %260 = vmatpush1.bf16.msra.mxu0 %v236
    %261 = vmatprep.subr.bf16.mxu0 0
    %262 = vmatpush1.bf16.msra.mxu0 0
    %263 = vmatprep.subr.bf16.mxu0 0
    %264 = vmatpush1.bf16.msra.mxu0 0
    %265 = vmatprep.subr.bf16.mxu0 0
    %266 = vmatpush1.bf16.msra.mxu0 0
    %267 = vmatprep.subr.bf16.mxu0 0
    %268 = vmatpush1.bf16.msra.mxu0 0
    %269 = vmatprep.subr.bf16.mxu0 0
    %270 = vmatpush1.bf16.msra.mxu0 0
    %271 = vmatprep.subr.bf16.mxu0 0
    %272 = vmatpush1.bf16.msra.mxu0 0
    %273 = vmatprep.subr.bf16.mxu0 0
    %274 = vmatpush1.bf16.msra.mxu0 0
    %275 = vmatprep.subr.bf16.mxu0 0
    %276 = vmatpush1.bf16.msra.mxu0 0
    %277 = vmatprep.mubr.bf16.mxu0 0
    %278 = vmatmul.mubr.bf16.gmra.mrb[0].mxu0 %v173
    %v279 = vpop.f32.mrb[0].mxu0
    %v280 = vadd.f32 %v195, %v279
    %v281 = vpop.f32.mrb[0].mxu0
    %v282 = vpop.f32.mrb[0].mxu0
    %v283 = vpop.f32.mrb[0].mxu0
    %284 = vdwg.mxu0
    %v285 = vadd.f32 %v280, %v172
    %vm286 = vcmp.ge.f32.partialorder %v285, 0.0
    %v287 = vmul.f32 %v285, 0.01
    %v288 = vsel %vm286, %v285, %v287
    %v289 = vpack.c.bf16 %v288, %v288
    %s290 = scalar_lea.vmem [#allocation7], 64
    %v291 = vld [vmem:[%s290] sm:$0xf]
    %v292 = vld [vmem:[%s290 + $0x4] sm:$0xf]
    %v293 = vld [vmem:[%s290 + $0x8] sm:$0xf]
    %v294 = vld [vmem:[%s290 + $0xc] sm:$0xf]
    %v295 = vld [vmem:[%s290 + $0x10] sm:$0xf]
    %v296 = vld [vmem:[%s290 + $0x14] sm:$0xf]
    %v297 = vld [vmem:[%s290 + $0x18] sm:$0xf]
    %v298 = vld [vmem:[%s290 + $0x1c] sm:$0xf]
    %v299 = vld [vmem:[%s290 + $0x20] sm:$0xf]
    %v300 = vld [vmem:[%s290 + $0x24] sm:$0xf]
    %v301 = vld [vmem:[%s290 + $0x28] sm:$0xf]
    %v302 = vld [vmem:[%s290 + $0x2c] sm:$0xf]
    %v303 = vld [vmem:[%s290 + $0x30] sm:$0xf]
    %v304 = vld [vmem:[%s290 + $0x34] sm:$0xf]
    %v305 = vld [vmem:[%s290 + $0x38] sm:$0xf]
    %v306 = vld [vmem:[%s290 + $0x3c] sm:$0xf]
    %s307 = scalar_lea.vmem %s4, 1
    %v308 = vld [vmem:[%s307] sm:$0x1]
    %v310 = vlaneseq
    %v311 = vshrl.u32 %v310, 7
    %v312 = vsub.s32 0, %v311
    %v313 = vrot.slane %v308, %v312
    %v331 = vunpack.c.l.b16 %v291
    %v332 = vunpack.c.l.b16 %v292
    %v333 = vunpack.c.l.b16 %v293
    %v334 = vunpack.c.l.b16 %v294
    %v335 = vunpack.c.l.b16 %v295
    %v336 = vunpack.c.l.b16 %v296
    %v337 = vunpack.c.l.b16 %v297
    %v338 = vunpack.c.l.b16 %v298
    %v339 = vunpack.c.l.b16 %v299
    %v340 = vunpack.c.l.b16 %v300
    %v341 = vunpack.c.l.b16 %v301
    %v342 = vunpack.c.l.b16 %v302
    %v343 = vunpack.c.l.b16 %v303
    %v344 = vunpack.c.l.b16 %v304
    %v345 = vunpack.c.l.b16 %v305
    %v346 = vunpack.c.l.b16 %v306
    %v347 = vpack.c.b16 %v332, %v331
    %v348 = vpack.c.b16 %v334, %v333
    %v349 = vpack.c.b16 %v336, %v335
    %v350 = vpack.c.b16 %v338, %v337
    %v351 = vpack.c.b16 %v340, %v339
    %v352 = vpack.c.b16 %v342, %v341
    %v353 = vpack.c.b16 %v344, %v343
    %v354 = vpack.c.b16 %v346, %v345
    %363 = vmatprep.subr.bf16.mxu0 0
    %364 = vmatpush1.bf16.msra.mxu0 %v347
    %365 = vmatprep.subr.bf16.mxu0 0
    %366 = vmatpush1.bf16.msra.mxu0 %v348
    %367 = vmatprep.subr.bf16.mxu0 0
    %368 = vmatpush1.bf16.msra.mxu0 %v349
    %369 = vmatprep.subr.bf16.mxu0 0
    %370 = vmatpush1.bf16.msra.mxu0 %v350
    %371 = vmatprep.subr.bf16.mxu0 0
    %372 = vmatpush1.bf16.msra.mxu0 %v351
    %373 = vmatprep.subr.bf16.mxu0 0
    %374 = vmatpush1.bf16.msra.mxu0 %v352
    %375 = vmatprep.subr.bf16.mxu0 0
    %376 = vmatpush1.bf16.msra.mxu0 %v353
    %377 = vmatprep.subr.bf16.mxu0 0
    %378 = vmatpush1.bf16.msra.mxu0 %v354
    %379 = vmatprep.subr.bf16.mxu0 0
    %380 = vmatpush1.bf16.msra.mxu0 0
    %381 = vmatprep.subr.bf16.mxu0 0
    %382 = vmatpush1.bf16.msra.mxu0 0
    %383 = vmatprep.subr.bf16.mxu0 0
    %384 = vmatpush1.bf16.msra.mxu0 0
    %385 = vmatprep.subr.bf16.mxu0 0
    %386 = vmatpush1.bf16.msra.mxu0 0
    %387 = vmatprep.subr.bf16.mxu0 0
    %388 = vmatpush1.bf16.msra.mxu0 0
    %389 = vmatprep.subr.bf16.mxu0 0
    %390 = vmatpush1.bf16.msra.mxu0 0
    %391 = vmatprep.subr.bf16.mxu0 0
    %392 = vmatpush1.bf16.msra.mxu0 0
    %393 = vmatprep.subr.bf16.mxu0 0
    %394 = vmatpush1.bf16.msra.mxu0 0
    %395 = vmatprep.mubr.bf16.mxu0 0
    %396 = vmatmul.mubr.bf16.gmra.mrb[0].mxu0 %v289
    %v397 = vpop.f32.mrb[0].mxu0
    %v398 = vadd.f32 %v313, %v397
    %v399 = vpop.f32.mrb[0].mxu0
    %v400 = vpop.f32.mrb[0].mxu0
    %v401 = vpop.f32.mrb[0].mxu0
    %402 = vdwg.mxu0
    %v403 = vadd.f32 %v398, %v288
    %vm404 = vcmp.ge.f32.partialorder %v403, 0.0
    %v405 = vmul.f32 %v403, 0.01
    %v406 = vsel %vm404, %v403, %v405
    %v407 = vld [vmem:[#allocation8] sm:$0xf]
    %v408 = vld [vmem:[#allocation8 + $0x4] sm:$0xf]
    %v409 = vld [vmem:[#allocation8 + $0x8] sm:$0xf]
    %v410 = vld [vmem:[#allocation8 + $0xc] sm:$0xf]
    %v411 = vld [vmem:[#allocation8 + $0x10] sm:$0xf]
    %v412 = vld [vmem:[#allocation8 + $0x14] sm:$0xf]
    %v413 = vld [vmem:[#allocation8 + $0x18] sm:$0xf]
    %v414 = vld [vmem:[#allocation8 + $0x1c] sm:$0xf]
    %v415 = vld [vmem:[#allocation8 + $0x20] sm:$0xf]
    %v416 = vld [vmem:[#allocation8 + $0x24] sm:$0xf]
    %v417 = vld [vmem:[#allocation8 + $0x28] sm:$0xf]
    %v418 = vld [vmem:[#allocation8 + $0x2c] sm:$0xf]
    %v419 = vld [vmem:[#allocation8 + $0x30] sm:$0xf]
    %v420 = vld [vmem:[#allocation8 + $0x34] sm:$0xf]
    %v421 = vld [vmem:[#allocation8 + $0x38] sm:$0xf]
    %v422 = vld [vmem:[#allocation8 + $0x3c] sm:$0xf]
    %v423 = vld [vmem:[%s6] sm:$0x1]
    %v424 = vpack.c.bf16 %v406, %v406
    %v426 = vlaneseq
    %v427 = vshrl.u32 %v426, 7
    %v428 = vsub.s32 0, %v427
    %v429 = vrot.slane %v423, %v428
    %v447 = vunpack.c.l.b16 %v407
    %v448 = vunpack.c.l.b16 %v408
    %v449 = vunpack.c.l.b16 %v409
    %v450 = vunpack.c.l.b16 %v410
    %v451 = vunpack.c.l.b16 %v411
    %v452 = vunpack.c.l.b16 %v412
    %v453 = vunpack.c.l.b16 %v413
    %v454 = vunpack.c.l.b16 %v414
    %v455 = vunpack.c.l.b16 %v415
    %v456 = vunpack.c.l.b16 %v416
    %v457 = vunpack.c.l.b16 %v417
    %v458 = vunpack.c.l.b16 %v418
    %v459 = vunpack.c.l.b16 %v419
    %v460 = vunpack.c.l.b16 %v420
    %v461 = vunpack.c.l.b16 %v421
    %v462 = vunpack.c.l.b16 %v422
    %v463 = vpack.c.b16 %v448, %v447
    %v464 = vpack.c.b16 %v450, %v449
    %v465 = vpack.c.b16 %v452, %v451
    %v466 = vpack.c.b16 %v454, %v453
    %v467 = vpack.c.b16 %v456, %v455
    %v468 = vpack.c.b16 %v458, %v457
    %v469 = vpack.c.b16 %v460, %v459
    %v470 = vpack.c.b16 %v462, %v461
    %479 = vmatprep.subr.bf16.mxu0 0
    %480 = vmatpush1.bf16.msra.mxu0 %v463
    %481 = vmatprep.subr.bf16.mxu0 0
    %482 = vmatpush1.bf16.msra.mxu0 %v464
    %483 = vmatprep.subr.bf16.mxu0 0
    %484 = vmatpush1.bf16.msra.mxu0 %v465
    %485 = vmatprep.subr.bf16.mxu0 0
    %486 = vmatpush1.bf16.msra.mxu0 %v466
    %487 = vmatprep.subr.bf16.mxu0 0
    %488 = vmatpush1.bf16.msra.mxu0 %v467
    %489 = vmatprep.subr.bf16.mxu0 0
    %490 = vmatpush1.bf16.msra.mxu0 %v468
    %491 = vmatprep.subr.bf16.mxu0 0
    %492 = vmatpush1.bf16.msra.mxu0 %v469
    %493 = vmatprep.subr.bf16.mxu0 0
    %494 = vmatpush1.bf16.msra.mxu0 %v470
    %495 = vmatprep.subr.bf16.mxu0 0
    %496 = vmatpush1.bf16.msra.mxu0 0
    %497 = vmatprep.subr.bf16.mxu0 0
    %498 = vmatpush1.bf16.msra.mxu0 0
    %499 = vmatprep.subr.bf16.mxu0 0
    %500 = vmatpush1.bf16.msra.mxu0 0
    %501 = vmatprep.subr.bf16.mxu0 0
    %502 = vmatpush1.bf16.msra.mxu0 0
    %503 = vmatprep.subr.bf16.mxu0 0
    %504 = vmatpush1.bf16.msra.mxu0 0
    %505 = vmatprep.subr.bf16.mxu0 0
    %506 = vmatpush1.bf16.msra.mxu0 0
    %507 = vmatprep.subr.bf16.mxu0 0
    %508 = vmatpush1.bf16.msra.mxu0 0
    %509 = vmatprep.subr.bf16.mxu0 0
    %510 = vmatpush1.bf16.msra.mxu0 0
    %511 = vmatprep.mubr.bf16.mxu0 0
    %512 = vmatmul.mubr.bf16.gmra.mrb[0].mxu0 %v424
    %v513 = vpop.f32.mrb[0].mxu0
    %v514 = vadd.f32 %v429, %v513
    %v515 = vpop.f32.mrb[0].mxu0
    %v516 = vpop.f32.mrb[0].mxu0
    %v517 = vpop.f32.mrb[0].mxu0
    %518 = vdwg.mxu0
    %v519 = vlaneseq
    %v520 = vand.u32 %v519, 127
    %vm521 = vcmp.lt.s32.totalorder %v520, 7
    %v522 = vsel %vm521, %v514, -1e+30
    %523 = vmax.xlane.f32.xlu0 %v522
    %v524 = vpop.xlane.xlu0 %523
    %v525 = vsub.f32 %v522, %v524
    %v526 = vmul.f32 %v525, 1.442695
    %v527 = vpow.pop %v526
    %528 = vadd.xlane.f32.xlu0 %v527
    %v529 = vpop.xlane.xlu0 %528
    %v530 = vrcp.pop %v529
    %v531 = vmul.f32 %v529, %v530
    %v532 = vsub.f32 2.0, %v531
    %v533 = vmul.f32 %v530, %v532
    %v534 = vmul.f32 %v527, %v533
    %535 = vst [vmem:[#allocation10] sm:$0xff] %v534
    // Predicated region
    $region46: #{tpu_custom_call.1} parent=1 // pred_check
      _
    $region47: #{tpu_custom_call.1} parent=1 // pred_check_branch
      %537 = sbr.rel (0) target = $region49
    $region48: #{tpu_custom_call.1} parent=1 // pred_region
      %s539 = ssub.s32 128, 128
      %540 = vsyncadd [#allocation4], %s539
      %s542 = sshll.u32 [#allocation10], 4
      %s543 = int_to_ptr.vmem [resolvable:$true] %s542
      %545 = dma.vmem_to_hbm [thread:$0]  %s543, 128, %s7, [#allocation4]
    $region49: #{tpu_custom_call.1} parent=1 // pred_fallthru
      _
    // Predicated region
    $region50: #{tpu_custom_call.1} parent=1 // pred_check
      _
    $region51: #{tpu_custom_call.1} parent=1 // pred_check_branch
      %547 = sbr.rel (0) target = $region53
    $region52: #{tpu_custom_call.1} parent=1 // pred_region
      %548 = dma.done [#allocation4], 128
    $region53: #{tpu_custom_call.1} parent=1 // pred_fallthru
      _
    %549 = vsyncpa [#allocation3], 1
    %550 = vsyncpa [#allocation6], 1
    %551 = vsyncpa [#allocation9], 1
    %552 = vsyncpa [#allocation4], 1

</llo_original>
